<compile_context>
chip_gen: v7x
topology: tpu7x:2x2x1
jax: 0.10.0
libtpu: 0.0.40
codegen_flags: <defaults>
</compile_context>

<pallas_src>
import functools

import jax
import jax.numpy as jnp
from jax.experimental import pallas as pl
from jax.experimental.pallas import tpu as pltpu

KH = KW = 3          # conv kernel size (padding=1, stride=1 -> "same")
PAD = 1


def _tensorcore_count():
    """2 on dual-TensorCore chips (v7x), else 1 (v5e/v6e). Never raises."""
    try:
        info = pltpu.get_tpu_info()
        for attr in ("num_cores", "tensorcore_count", "core_count"):
            n = getattr(info, attr, None)
            if n is not None:
                n = int(n)
                if 0 < n <= 8:
                    return n
    except Exception:
        pass
    try:
        kind = jax.devices()[0].device_kind.lower()
        if "v7" in kind:
            return 2
    except Exception:
        pass
    return 1


def _pick_nblk(n, h):
    """Images per grid step: one step per TensorCore, nblk must divide n."""
    n_tc = _tensorcore_count()
    target = max(1, -(-n // n_tc))                       # cdiv(n, n_tc)
    target = min(target, max(1, 2048 // max(h, 1)))      # keep blocks modest
    return max(c for c in range(1, target + 1) if n % c == 0)


def _conv3x3_kernel(x_ref, bmat_ref, bias_ref, o_ref):
    """One grid step = nblk images of the flattened (bs*seq) batch.

    x_ref:    (nblk, H, Cin*W)     channels-folded, UNPADDED input block
    bmat_ref: (KH, Cin*W, W*Cout)  banded weights (lane-dense RHS, W-pad folded)
    bias_ref: (1, W*Cout)          bias tiled per output-w position
    o_ref:    (nblk, H, W*Cout)    lane-dense output block
    """
    nblk, h, cinw = x_ref.shape
    wcout = o_ref.shape[2]

    # <=128 output rows (M) at a time: f32 accumulator stays <=16 vregs and
    # the three tap values stay small -> no vreg spilling even when the whole
    # flattened batch is a single grid step (M would be 256 on v6e otherwise).
    imgs_per_chunk = max(1, 128 // h)
    for i0 in range(0, nblk, imgs_per_chunk):
        nb = min(imgs_per_chunk, nblk - i0)
        m = nb * h

        x = x_ref[i0:i0 + nb]                                   # (nb, h, cinw)
        zrow = jnp.zeros((nb, 1, cinw), x.dtype)
        # H zero-padding handled here: output row r reads input rows
        # r-1, r, r+1 with zeros outside [0, H).
        x_up = jnp.concatenate([zrow, x[:, :h - 1, :]], axis=1)  # x[r-1]
        x_dn = jnp.concatenate([x[:, 1:, :], zrow], axis=1)      # x[r+1]

        acc = jnp.dot(x_up.reshape(m, cinw), bmat_ref[0],
                      preferred_element_type=jnp.float32)
        acc = acc + jnp.dot(x.reshape(m, cinw), bmat_ref[1],
                            preferred_element_type=jnp.float32)
        acc = acc + jnp.dot(x_dn.reshape(m, cinw), bmat_ref[2],
                            preferred_element_type=jnp.float32)
        acc = acc + bias_ref[...]
        o_ref[i0:i0 + nb] = acc.reshape(nb, h, wcout).astype(o_ref.dtype)


def _banded_weights(w_oihw, W):
    """Fold the kw taps + W zero-padding into a (KH, Cin*W, W*Cout) banded RHS.

    bmat[kh, ci*W + w_in, w_out*Cout + co] = w[co, ci, kh, w_in - w_out + PAD],
    zero whenever that kw index falls outside [0, KW) (this also implements
    the zero padding along W).
    """
    Cout, Cin, KHd, KWd = w_oihw.shape
    w_in = jnp.arange(W)
    w_out = jnp.arange(W)
    kw = w_in[:, None] - w_out[None, :] + PAD            # (W_in, W_out)
    valid = (kw >= 0) & (kw < KWd)
    kw_c = jnp.clip(kw, 0, KWd - 1)
    wt = jnp.transpose(w_oihw, (2, 1, 3, 0))             # (KH, Cin, KW, Cout)
    g = wt[:, :, kw_c, :]                                # (KH, Cin, Win, Wout, Cout)
    bmat = jnp.where(valid[None, None, :, :, None], g, 0.0)
    return bmat.reshape(KHd, Cin * W, W * Cout).astype(w_oihw.dtype)


def _conv2d_same3x3(x_nchw, bmat, bias_row, *, nblk=None, channels_last=False):
    """Conv2d(Cin, Cout, 3, stride=1, padding=1) forward. NCHW input."""
    N, Cin, H, W = x_nchw.shape
    WCout = bias_row.shape[1]
    Cout = WCout // W
    CinW = Cin * W

    if nblk is None or N % nblk != 0:
        nblk = _pick_nblk(N, H)

    # Single wrapper-side input layout op: NCHW -> (N, H, Cin*W).  No jnp.pad
    # round trip: the H pad lives in the kernel, the W pad in the banded RHS.
    x_folded = jnp.transpose(x_nchw, (0, 2, 1, 3)).reshape(N, H, CinW)

    y = pl.pallas_call(
        _conv3x3_kernel,
        out_shape=jax.ShapeDtypeStruct((N, H, WCout), x_nchw.dtype),
        grid_spec=pltpu.PrefetchScalarGridSpec(
            num_scalar_prefetch=0,
            grid=(N // nblk,),
            in_specs=[
                pl.BlockSpec((nblk, H, CinW), lambda n: (n, 0, 0)),
                # Constant block index across the (1- or 2-step) grid ->
                # fetched once, not re-DMA'd per step.
                pl.BlockSpec((KH, CinW, WCout), lambda n: (0, 0, 0)),
                pl.BlockSpec((1, WCout), lambda n: (0, 0)),
            ],
            out_specs=pl.BlockSpec((nblk, H, WCout), lambda n: (n, 0, 0)),
        ),
        compiler_params=pltpu.CompilerParams(
            dimension_semantics=("parallel",)),
    )(x_folded, bmat, bias_row)

    y = y.reshape(N, H, W, Cout)          # free reshape of the lane-dense output
    if channels_last:
        return y                           # (N, H, W, Cout)
    return jnp.transpose(y, (0, 3, 1, 2))  # back to PyTorch NCHW


def time_distributed(module_fn, x):
    """Exact port of TimeDistributed.forward."""
    if x.ndim <= 2:
        return module_fn(x)
    bs, seq_len = x.shape[0], x.shape[1]
    x_flat = x.reshape((bs * seq_len,) + x.shape[2:])
    y_flat = module_fn(x_flat)
    return y_flat.reshape((bs, seq_len) + y_flat.shape[1:])


def make_time_distributed_conv3x3(w_oihw, b, spatial_w, *, nblk=None,
                                  channels_last=False):
    """TimeDistributed(Conv2d(Cin, Cout, 3, padding=1)) forward with the
    banded RHS / tiled bias precomputed ONCE (hoisted out of the per-call
    path; they depend only on the parameters and the spatial width)."""
    W = int(spatial_w)
    Cout = w_oihw.shape[0]
    bmat = jax.block_until_ready(_banded_weights(w_oihw, W))
    bias_row = jax.block_until_ready(jnp.tile(b, W).reshape(1, W * Cout))

    conv = functools.partial(_conv2d_same3x3, bmat=bmat, bias_row=bias_row,
                             nblk=nblk, channels_last=channels_last)
    return functools.partial(time_distributed, conv)


if __name__ == "__main__":
    bs, seq_len, C_in, H, W = 2, 8, 4, 16, 16
    C_out = 8

    key = jax.random.PRNGKey(0)
    kx, kw_key, kb = jax.random.split(key, 3)

    # Deterministic synthetic parameters (shapes as nn.Conv2d(4, 8, 3, padding=1)).
    x = jax.random.normal(kx, (bs, seq_len, C_in, H, W), dtype=jnp.float32)
    w_oihw = jax.random.normal(kw_key, (C_out, C_in, KH, KW), dtype=jnp.float32) * 0.1
    b = jax.random.normal(kb, (C_out,), dtype=jnp.float32) * 0.1

    td_conv = make_time_distributed_conv3x3(w_oihw, b, spatial_w=W)

    out = td_conv(x)
    out = jax.block_until_ready(out)
    assert out.shape == (bs, seq_len, C_out, H, W), out.shape

    # Pure-JAX reference for the same semantics.
    x_flat = x.reshape(bs * seq_len, C_in, H, W)
    ref = jax.lax.conv_general_dilated(
        x_flat, w_oihw, window_strides=(1, 1),
        padding=((PAD, PAD), (PAD, PAD)),
        dimension_numbers=("NCHW", "OIHW", "NCHW"),
    ) + b[None, :, None, None]
    ref = ref.reshape(bs, seq_len, C_out, H, W)
    assert jnp.allclose(out, ref, rtol=1e-4, atol=1e-4), \
        float(jnp.max(jnp.abs(out - ref)))

    print("KERNEL_OK")
</pallas_src>

<mosaic_0001>
module attributes {stable_mosaic.version = 11 : i64} {
  func.func @_conv3x3_kernel(%arg0: i32, %arg1: memref<16x16x64xf32, #tpu.memory_space<vmem>>, %arg2: memref<3x64x128xf32, #tpu.memory_space<vmem>>, %arg3: memref<1x128xf32, #tpu.memory_space<vmem>>, %arg4: memref<16x16x128xf32, #tpu.memory_space<vmem>>) attributes {dimension_semantics = [#tpu.dimension_semantics<parallel>], iteration_bounds = array<i64: 1>, scalar_prefetch = 0 : i64, scratch_operands = 0 : i64, tpu.core_type = #tpu.core_type<tc>, window_params = [{transform_indices = @transform_0, window_bounds = array<i64: 16, 16, 64>}, {pipeline_mode = #tpu.pipeline_mode<synchronous>, transform_indices = @transform_1, window_bounds = array<i64: 3, 64, 128>}, {pipeline_mode = #tpu.pipeline_mode<synchronous>, transform_indices = @transform_2, window_bounds = array<i64: 1, 128>}, {transform_indices = @transform_3, window_bounds = array<i64: 16, 16, 128>}]} {
    %c0 = arith.constant 0 : index
    %c0_0 = arith.constant 0 : index
    %c0_1 = arith.constant 0 : index
    %0 = vector.load %arg1[%c0, %c0_0, %c0_1] : memref<16x16x64xf32, #tpu.memory_space<vmem>>, vector<8x16x64xf32>
    %cst = arith.constant 0.000000e+00 : f32
    %1 = vector.broadcast %cst : f32 to vector<8x1x64xf32>
    %2 = vector.extract_strided_slice %0 {offsets = [0, 0, 0], sizes = [8, 15, 64], strides = [1, 1, 1]} : vector<8x16x64xf32> to vector<8x15x64xf32>
    %3 = tpu.concatenate %1, %2 in 1 : vector<8x1x64xf32>, vector<8x15x64xf32> -> vector<8x16x64xf32>
    %4 = vector.extract_strided_slice %0 {offsets = [0, 1, 0], sizes = [8, 15, 64], strides = [1, 1, 1]} : vector<8x16x64xf32> to vector<8x15x64xf32>
    %5 = tpu.concatenate %4, %1 in 1 : vector<8x15x64xf32>, vector<8x1x64xf32> -> vector<8x16x64xf32>
    %6 = vector.shape_cast %3 : vector<8x16x64xf32> to vector<128x64xf32>
    %c0_2 = arith.constant 0 : index
    %c0_3 = arith.constant 0 : index
    %c0_4 = arith.constant 0 : index
    %7 = vector.load %arg2[%c0_2, %c0_3, %c0_4] : memref<3x64x128xf32, #tpu.memory_space<vmem>>, vector<1x64x128xf32>
    %8 = vector.shape_cast %7 : vector<1x64x128xf32> to vector<64x128xf32>
    %cst_5 = arith.constant dense<0.000000e+00> : vector<128x128xf32>
    %9 = tpu.matmul %6, %8, %cst_5 {dimension_numbers = #tpu.dot_dimension_numbers<[1], [0], [0], [1], [0, 0, 1, 1], [], []>} : vector<128x64xf32>, vector<64x128xf32>, vector<128x128xf32> -> vector<128x128xf32>
    %10 = vector.shape_cast %0 : vector<8x16x64xf32> to vector<128x64xf32>
    %c1 = arith.constant 1 : index
    %c0_6 = arith.constant 0 : index
    %c0_7 = arith.constant 0 : index
    %11 = vector.load %arg2[%c1, %c0_6, %c0_7] : memref<3x64x128xf32, #tpu.memory_space<vmem>>, vector<1x64x128xf32>
    %12 = vector.shape_cast %11 : vector<1x64x128xf32> to vector<64x128xf32>
    %cst_8 = arith.constant dense<0.000000e+00> : vector<128x128xf32>
    %13 = tpu.matmul %10, %12, %cst_8 {dimension_numbers = #tpu.dot_dimension_numbers<[1], [0], [0], [1], [0, 0, 1, 1], [], []>} : vector<128x64xf32>, vector<64x128xf32>, vector<128x128xf32> -> vector<128x128xf32>
    %14 = arith.addf %9, %13 : vector<128x128xf32>
    %15 = vector.shape_cast %5 : vector<8x16x64xf32> to vector<128x64xf32>
    %c2 = arith.constant 2 : index
    %c0_9 = arith.constant 0 : index
    %c0_10 = arith.constant 0 : index
    %16 = vector.load %arg2[%c2, %c0_9, %c0_10] : memref<3x64x128xf32, #tpu.memory_space<vmem>>, vector<1x64x128xf32>
    %17 = vector.shape_cast %16 : vector<1x64x128xf32> to vector<64x128xf32>
    %cst_11 = arith.constant dense<0.000000e+00> : vector<128x128xf32>
    %18 = tpu.matmul %15, %17, %cst_11 {dimension_numbers = #tpu.dot_dimension_numbers<[1], [0], [0], [1], [0, 0, 1, 1], [], []>} : vector<128x64xf32>, vector<64x128xf32>, vector<128x128xf32> -> vector<128x128xf32>
    %19 = arith.addf %14, %18 : vector<128x128xf32>
    %c0_12 = arith.constant 0 : index
    %c0_13 = arith.constant 0 : index
    %20 = vector.load %arg3[%c0_12, %c0_13] : memref<1x128xf32, #tpu.memory_space<vmem>>, vector<1x128xf32>
    %21 = vector.broadcast %20 : vector<1x128xf32> to vector<128x128xf32>
    %22 = arith.addf %19, %21 : vector<128x128xf32>
    %23 = vector.shape_cast %22 : vector<128x128xf32> to vector<8x16x128xf32>
    %c0_14 = arith.constant 0 : index
    %c0_15 = arith.constant 0 : index
    %c0_16 = arith.constant 0 : index
    %24 = vector.load %arg4[%c0_14, %c0_15, %c0_16] : memref<16x16x128xf32, #tpu.memory_space<vmem>>, vector<8x16x128xf32>
    tpu.vector_store %arg4[%c0_14, %c0_15, %c0_16], %23 {strides = array<i32>} : memref<16x16x128xf32, #tpu.memory_space<vmem>>, vector<8x16x128xf32>,
    %c8 = arith.constant 8 : index
    %c0_17 = arith.constant 0 : index
    %c0_18 = arith.constant 0 : index
    %25 = vector.load %arg1[%c8, %c0_17, %c0_18] : memref<16x16x64xf32, #tpu.memory_space<vmem>>, vector<8x16x64xf32>
    %cst_19 = arith.constant 0.000000e+00 : f32
    %26 = vector.broadcast %cst_19 : f32 to vector<8x1x64xf32>
    %27 = vector.extract_strided_slice %25 {offsets = [0, 0, 0], sizes = [8, 15, 64], strides = [1, 1, 1]} : vector<8x16x64xf32> to vector<8x15x64xf32>
    %28 = tpu.concatenate %26, %27 in 1 : vector<8x1x64xf32>, vector<8x15x64xf32> -> vector<8x16x64xf32>
    %29 = vector.extract_strided_slice %25 {offsets = [0, 1, 0], sizes = [8, 15, 64], strides = [1, 1, 1]} : vector<8x16x64xf32> to vector<8x15x64xf32>
    %30 = tpu.concatenate %29, %26 in 1 : vector<8x15x64xf32>, vector<8x1x64xf32> -> vector<8x16x64xf32>
    %31 = vector.shape_cast %28 : vector<8x16x64xf32> to vector<128x64xf32>
    %c0_20 = arith.constant 0 : index
    %c0_21 = arith.constant 0 : index
    %c0_22 = arith.constant 0 : index
    %32 = vector.load %arg2[%c0_20, %c0_21, %c0_22] : memref<3x64x128xf32, #tpu.memory_space<vmem>>, vector<1x64x128xf32>
    %33 = vector.shape_cast %32 : vector<1x64x128xf32> to vector<64x128xf32>
    %cst_23 = arith.constant dense<0.000000e+00> : vector<128x128xf32>
    %34 = tpu.matmul %31, %33, %cst_23 {dimension_numbers = #tpu.dot_dimension_numbers<[1], [0], [0], [1], [0, 0, 1, 1], [], []>} : vector<128x64xf32>, vector<64x128xf32>, vector<128x128xf32> -> vector<128x128xf32>
    %35 = vector.shape_cast %25 : vector<8x16x64xf32> to vector<128x64xf32>
    %c1_24 = arith.constant 1 : index
    %c0_25 = arith.constant 0 : index
    %c0_26 = arith.constant 0 : index
    %36 = vector.load %arg2[%c1_24, %c0_25, %c0_26] : memref<3x64x128xf32, #tpu.memory_space<vmem>>, vector<1x64x128xf32>
    %37 = vector.shape_cast %36 : vector<1x64x128xf32> to vector<64x128xf32>
    %cst_27 = arith.constant dense<0.000000e+00> : vector<128x128xf32>
    %38 = tpu.matmul %35, %37, %cst_27 {dimension_numbers = #tpu.dot_dimension_numbers<[1], [0], [0], [1], [0, 0, 1, 1], [], []>} : vector<128x64xf32>, vector<64x128xf32>, vector<128x128xf32> -> vector<128x128xf32>
    %39 = arith.addf %34, %38 : vector<128x128xf32>
    %40 = vector.shape_cast %30 : vector<8x16x64xf32> to vector<128x64xf32>
    %c2_28 = arith.constant 2 : index
    %c0_29 = arith.constant 0 : index
    %c0_30 = arith.constant 0 : index
    %41 = vector.load %arg2[%c2_28, %c0_29, %c0_30] : memref<3x64x128xf32, #tpu.memory_space<vmem>>, vector<1x64x128xf32>
    %42 = vector.shape_cast %41 : vector<1x64x128xf32> to vector<64x128xf32>
    %cst_31 = arith.constant dense<0.000000e+00> : vector<128x128xf32>
    %43 = tpu.matmul %40, %42, %cst_31 {dimension_numbers = #tpu.dot_dimension_numbers<[1], [0], [0], [1], [0, 0, 1, 1], [], []>} : vector<128x64xf32>, vector<64x128xf32>, vector<128x128xf32> -> vector<128x128xf32>
    %44 = arith.addf %39, %43 : vector<128x128xf32>
    %c0_32 = arith.constant 0 : index
    %c0_33 = arith.constant 0 : index
    %45 = vector.load %arg3[%c0_32, %c0_33] : memref<1x128xf32, #tpu.memory_space<vmem>>, vector<1x128xf32>
    %46 = vector.broadcast %45 : vector<1x128xf32> to vector<128x128xf32>
    %47 = arith.addf %44, %46 : vector<128x128xf32>
    %48 = vector.shape_cast %47 : vector<128x128xf32> to vector<8x16x128xf32>
    %c8_34 = arith.constant 8 : index
    %c0_35 = arith.constant 0 : index
    %c0_36 = arith.constant 0 : index
    %49 = vector.load %arg4[%c8_34, %c0_35, %c0_36] : memref<16x16x128xf32, #tpu.memory_space<vmem>>, vector<8x16x128xf32>
    tpu.vector_store %arg4[%c8_34, %c0_35, %c0_36], %48 {strides = array<i32>} : memref<16x16x128xf32, #tpu.memory_space<vmem>>, vector<8x16x128xf32>,
    return
  }
  func.func @transform_0(%arg0: i32) -> (i32, i32, i32) {
    %c0_i32 = arith.constant 0 : i32
    %c0_i32_0 = arith.constant 0 : i32
    %c0_i32_1 = arith.constant 0 : i32
    return %arg0, %c0_i32, %c0_i32_0 : i32, i32, i32
  }
  func.func @transform_1(%arg0: i32) -> (i32, i32, i32) {
    %c0_i32 = arith.constant 0 : i32
    %c0_i32_0 = arith.constant 0 : i32
    %c0_i32_1 = arith.constant 0 : i32
    %c0_i32_2 = arith.constant 0 : i32
    return %c0_i32, %c0_i32_0, %c0_i32_1 : i32, i32, i32
  }
  func.func @transform_2(%arg0: i32) -> (i32, i32) {
    %c0_i32 = arith.constant 0 : i32
    %c0_i32_0 = arith.constant 0 : i32
    %c0_i32_1 = arith.constant 0 : i32
    return %c0_i32, %c0_i32_0 : i32, i32
  }
  func.func @transform_3(%arg0: i32) -> (i32, i32, i32) {
    %c0_i32 = arith.constant 0 : i32
    %c0_i32_0 = arith.constant 0 : i32
    %c0_i32_1 = arith.constant 0 : i32
    return %arg0, %c0_i32, %c0_i32_0 : i32, i32, i32
  }
}

</mosaic_0001>

<llo_original>
// kernel: tpu_custom_call.1
$region0: #{tpu_custom_call.1}
  #allocation0 [shape = 'u32[]', space=smem, size = 0x4, offset = 0x4, fixed_abs, tag = 'smem constant byte address 0x4 - core index']
  #allocation1 [shape = 'u32[144,128]{1,0:T(1,128)}', space=vmem, size = 0x12000, scoped, tag = 'internal scratch']
  %s0 = inlined_call_operand.hbm [shape: f32[16,16,64], index: 0, kind: input, shape index: {}]
  %s1 = inlined_call_operand.hbm [shape: f32[3,64,128], index: 1, kind: input, shape index: {}]
  %s2 = inlined_call_operand.vmem [shape: f32[1,128], index: 2, kind: input, shape index: {}]
  %s3 = inlined_call_operand.hbm [shape: f32[16,16,128], index: 3, kind: output, shape index: {}]
  %s4 = sld [smem:[#allocation0]]
  $region30: #{tpu_custom_call.1} parent=0
    _
  %s6 = ssub.s32 1, %s4
  %s7 = scalar_select 0, %s6, %s4
  $region1: #{tpu_custom_call.1} parent=0
    #allocation2 [shape = 'u8[131072]{0}', space=vmem, size = 0x20000, scoped, tag = 'input window, operand 0, single buffered']
    #allocation3 [shape = 's32[1]{0}', space=sflag, size = 0x4, scoped, tag = 'scoped memory for tpu_custom_call.1']
    #allocation4 [shape = 's32[1]{0}', space=sflag, size = 0x4, scoped, tag = 'scoped memory for tpu_custom_call.1']
    #allocation5 [shape = 'u8[98304]{0}', space=vmem, size = 0x18000, scoped, tag = 'input window, operand 1, single buffered']
    #allocation6 [shape = 's32[1]{0}', space=sflag, size = 0x4, scoped, tag = 'scoped memory for tpu_custom_call.1']
    #allocation7 [shape = 'u8[131072]{0}', space=vmem, size = 0x20000, scoped, tag = 'output window, operand 0, single buffered']
    %8 = vsyncpa [#allocation3], 0
    %9 = vsyncpa [#allocation6], 0
    %10 = vsyncpa [#allocation4], 0
    // Predicated region
    $region2: #{tpu_custom_call.1} parent=1 // pred_check
      _
    $region3: #{tpu_custom_call.1} parent=1 // pred_check_branch
      %12 = sbr.rel (0) target = $region5
    $region4: #{tpu_custom_call.1} parent=1 // pred_region
      %s14 = ssub.s32 4096, 4096
      %15 = vsyncadd [#allocation3], %s14
      %s16 = sshll.u32 [#allocation2], 4
      %s17 = int_to_ptr.vmem [resolvable:$true] %s16
      %22 = dma.hbm_to_vmem [thread:$0]  %s0, 4096, %s17, [#allocation3], 128, 128, 8
    $region5: #{tpu_custom_call.1} parent=1 // pred_fallthru
      _
    // Predicated region
    $region6: #{tpu_custom_call.1} parent=1 // pred_check
      _
    $region7: #{tpu_custom_call.1} parent=1 // pred_check_branch
      %24 = sbr.rel (0) target = $region9
    $region8: #{tpu_custom_call.1} parent=1 // pred_region
      %s26 = ssub.s32 3072, 3072
      %27 = vsyncadd [#allocation6], %s26
      %s28 = sshll.u32 [#allocation5], 4
      %s29 = int_to_ptr.vmem [resolvable:$true] %s28
      %34 = dma.hbm_to_vmem [thread:$0]  %s1, 3072, %s29, [#allocation6], 128, 128, 8
    $region9: #{tpu_custom_call.1} parent=1 // pred_fallthru
      _
    // Predicated region
    $region10: #{tpu_custom_call.1} parent=1 // pred_check
      _
    $region11: #{tpu_custom_call.1} parent=1 // pred_check_branch
      %36 = sbr.rel (0) target = $region13
    $region12: #{tpu_custom_call.1} parent=1 // pred_region
      _
    $region13: #{tpu_custom_call.1} parent=1 // pred_fallthru
      _
    // Predicated region
    $region14: #{tpu_custom_call.1} parent=1 // pred_check
      _
    $region15: #{tpu_custom_call.1} parent=1 // pred_check_branch
      %38 = sbr.rel (0) target = $region17
    $region16: #{tpu_custom_call.1} parent=1 // pred_region
      %39 = dma.done [#allocation3], 4096
    $region17: #{tpu_custom_call.1} parent=1 // pred_fallthru
      _
    // Predicated region
    $region18: #{tpu_custom_call.1} parent=1 // pred_check
      _
    $region19: #{tpu_custom_call.1} parent=1 // pred_check_branch
      %41 = sbr.rel (0) target = $region21
    $region20: #{tpu_custom_call.1} parent=1 // pred_region
      %42 = dma.done [#allocation6], 3072
    $region21: #{tpu_custom_call.1} parent=1 // pred_fallthru
      _
    %v43 = vld [vmem:[#allocation2] sm:$0xff]
    %v44 = vld [vmem:[#allocation2 + $0x8] sm:$0xff]
    %v45 = vld [vmem:[#allocation2 + $0x10] sm:$0xff]
    %v46 = vld [vmem:[#allocation2 + $0x18] sm:$0xff]
    %v47 = vld [vmem:[#allocation2 + $0x20] sm:$0xff]
    %v48 = vld [vmem:[#allocation2 + $0x28] sm:$0xff]
    %v49 = vld [vmem:[#allocation2 + $0x30] sm:$0xff]
    %v50 = vld [vmem:[#allocation2 + $0x38] sm:$0xff]
    %v51 = vld [vmem:[#allocation2 + $0x40] sm:$0xff]
    %v52 = vld [vmem:[#allocation2 + $0x48] sm:$0xff]
    %v53 = vld [vmem:[#allocation2 + $0x50] sm:$0xff]
    %v54 = vld [vmem:[#allocation2 + $0x58] sm:$0xff]
    %v55 = vld [vmem:[#allocation2 + $0x60] sm:$0xff]
    %v56 = vld [vmem:[#allocation2 + $0x68] sm:$0xff]
    %v57 = vld [vmem:[#allocation2 + $0x70] sm:$0xff]
    %v58 = vld [vmem:[#allocation2 + $0x78] sm:$0xff]
    %vm75 = vcmask 1040384
    %v76 = vrot.slane %v43, 7
    %v77 = vrot.slane %v44, 7
    %v78 = vsel %vm75, %v76, %v77
    %v79 = vrot.slane %v45, 7
    %v80 = vrot.slane %v46, 7
    %v81 = vsel %vm75, %v79, %v80
    %v82 = vrot.slane %v47, 7
    %v83 = vrot.slane %v48, 7
    %v84 = vsel %vm75, %v82, %v83
    %v85 = vrot.slane %v49, 7
    %v86 = vrot.slane %v50, 7
    %v87 = vsel %vm75, %v85, %v86
    %v88 = vrot.slane %v51, 7
    %v89 = vrot.slane %v52, 7
    %v90 = vsel %vm75, %v88, %v89
    %v91 = vrot.slane %v53, 7
    %v92 = vrot.slane %v54, 7
    %v93 = vsel %vm75, %v91, %v92
    %v94 = vrot.slane %v55, 7
    %v95 = vrot.slane %v56, 7
    %v96 = vsel %vm75, %v94, %v95
    %v97 = vrot.slane %v57, 7
    %v98 = vrot.slane %v58, 7
    %v99 = vsel %vm75, %v97, %v98
    %v108 = vsel %vm75, 0.0, %v76
    %v109 = vsel %vm75, 0.0, %v79
    %v110 = vsel %vm75, 0.0, %v82
    %v111 = vsel %vm75, 0.0, %v85
    %v112 = vsel %vm75, 0.0, %v88
    %v113 = vsel %vm75, 0.0, %v91
    %v114 = vsel %vm75, 0.0, %v94
    %v115 = vsel %vm75, 0.0, %v97
    %vm116 = vcmask 1046528
    %v117 = vrot.slane %v43, 1
    %v118 = vrot.slane %v44, 1
    %v119 = vsel %vm116, %v117, %v118
    %v120 = vrot.slane %v45, 1
    %v121 = vrot.slane %v46, 1
    %v122 = vsel %vm116, %v120, %v121
    %v123 = vrot.slane %v47, 1
    %v124 = vrot.slane %v48, 1
    %v125 = vsel %vm116, %v123, %v124
    %v126 = vrot.slane %v49, 1
    %v127 = vrot.slane %v50, 1
    %v128 = vsel %vm116, %v126, %v127
    %v129 = vrot.slane %v51, 1
    %v130 = vrot.slane %v52, 1
    %v131 = vsel %vm116, %v129, %v130
    %v132 = vrot.slane %v53, 1
    %v133 = vrot.slane %v54, 1
    %v134 = vsel %vm116, %v132, %v133
    %v135 = vrot.slane %v55, 1
    %v136 = vrot.slane %v56, 1
    %v137 = vsel %vm116, %v135, %v136
    %v138 = vrot.slane %v57, 1
    %v139 = vrot.slane %v58, 1
    %v140 = vsel %vm116, %v138, %v139
    %v149 = vsel %vm116, %v118, 0.0
    %v150 = vsel %vm116, %v121, 0.0
    %v151 = vsel %vm116, %v124, 0.0
    %v152 = vsel %vm116, %v127, 0.0
    %v153 = vsel %vm116, %v130, 0.0
    %v154 = vsel %vm116, %v133, 0.0
    %v155 = vsel %vm116, %v136, 0.0
    %v156 = vsel %vm116, %v139, 0.0
    %v157 = vld [vmem:[#allocation5] sm:$0xff]
    %v158 = vld [vmem:[#allocation5 + $0x8] sm:$0xff]
    %v159 = vld [vmem:[#allocation5 + $0x10] sm:$0xff]
    %v160 = vld [vmem:[#allocation5 + $0x18] sm:$0xff]
    %v161 = vld [vmem:[#allocation5 + $0x20] sm:$0xff]
    %v162 = vld [vmem:[#allocation5 + $0x28] sm:$0xff]
    %v163 = vld [vmem:[#allocation5 + $0x30] sm:$0xff]
    %v164 = vld [vmem:[#allocation5 + $0x38] sm:$0xff]
    %s165 = scalar_lea.vmem [#allocation5], 64
    %v166 = vld [vmem:[%s165] sm:$0xff]
    %v167 = vld [vmem:[%s165 + $0x8] sm:$0xff]
    %v168 = vld [vmem:[%s165 + $0x10] sm:$0xff]
    %v169 = vld [vmem:[%s165 + $0x18] sm:$0xff]
    %v170 = vld [vmem:[%s165 + $0x20] sm:$0xff]
    %v171 = vld [vmem:[%s165 + $0x28] sm:$0xff]
    %v172 = vld [vmem:[%s165 + $0x30] sm:$0xff]
    %v173 = vld [vmem:[%s165 + $0x38] sm:$0xff]
    %vm174 = vcmask 523264
    %v175 = vsel %vm174, %v43, 0
    %v177 = vsel %vm174, %v44, 0
    %v179 = vsel %vm174, %v45, 0
    %v181 = vsel %vm174, %v46, 0
    %v183 = vsel %vm174, %v47, 0
    %v185 = vsel %vm174, %v48, 0
    %v187 = vsel %vm174, %v49, 0
    %v189 = vsel %vm174, %v50, 0
    %v191 = vsel %vm174, %v51, 0
    %v193 = vsel %vm174, %v52, 0
    %v195 = vsel %vm174, %v53, 0
    %v197 = vsel %vm174, %v54, 0
    %v199 = vsel %vm174, %v55, 0
    %v201 = vsel %vm174, %v56, 0
    %v203 = vsel %vm174, %v57, 0
    %v205 = vsel %vm174, %v58, 0
    %207 = vmatprep.subr.mxu0 0.0
    %208 = vmatpush1.msra.mxu0 %v166
    %209 = vmatprep.subr.mxu0 0.0
    %210 = vmatpush1.msra.mxu0 %v167
    %211 = vmatprep.subr.mxu0 0.0
    %212 = vmatpush1.msra.mxu0 %v168
    %213 = vmatprep.subr.mxu0 0.0
    %214 = vmatpush1.msra.mxu0 %v169
    %215 = vmatprep.subr.mxu0 0.0
    %216 = vmatpush1.msra.mxu0 %v170
    %217 = vmatprep.subr.mxu0 0.0
    %218 = vmatpush1.msra.mxu0 %v171
    %219 = vmatprep.subr.mxu0 0.0
    %220 = vmatpush1.msra.mxu0 %v172
    %221 = vmatprep.subr.mxu0 0.0
    %222 = vmatpush1.msra.mxu0 %v173
    %223 = vmatprep.subr.mxu0 0.0
    %224 = vmatpush1.msra.mxu0 0.0
    %225 = vmatprep.subr.mxu0 0.0
    %226 = vmatpush1.msra.mxu0 0.0
    %227 = vmatprep.subr.mxu0 0.0
    %228 = vmatpush1.msra.mxu0 0.0
    %229 = vmatprep.subr.mxu0 0.0
    %230 = vmatpush1.msra.mxu0 0.0
    %231 = vmatprep.subr.mxu0 0.0
    %232 = vmatpush1.msra.mxu0 0.0
    %233 = vmatprep.subr.mxu0 0.0
    %234 = vmatpush1.msra.mxu0 0.0
    %235 = vmatprep.subr.mxu0 0.0
    %236 = vmatpush1.msra.mxu0 0.0
    %237 = vmatprep.subr.mxu0 0.0
    %238 = vmatpush1.msra.mxu0 0.0
    %239 = vmatprep.subr.mxu0 0.0
    %240 = vmatpush1.msra.mxu0 0.0
    %241 = vmatprep.subr.mxu0 0.0
    %242 = vmatpush1.msra.mxu0 0.0
    %243 = vmatprep.subr.mxu0 0.0
    %244 = vmatpush1.msra.mxu0 0.0
    %245 = vmatprep.subr.mxu0 0.0
    %246 = vmatpush1.msra.mxu0 0.0
    %247 = vmatprep.subr.mxu0 0.0
    %248 = vmatpush1.msra.mxu0 0.0
    %249 = vmatprep.subr.mxu0 0.0
    %250 = vmatpush1.msra.mxu0 0.0
    %251 = vmatprep.subr.mxu0 0.0
    %252 = vmatpush1.msra.mxu0 0.0
    %253 = vmatprep.subr.mxu0 0.0
    %254 = vmatpush1.msra.mxu0 0.0
    %255 = vmatprep.subr.mxu0 0.0
    %256 = vmatpush1.msra.mxu0 0.0
    %257 = vmatprep.subr.mxu0 0.0
    %258 = vmatpush1.msra.mxu0 0.0
    %259 = vmatprep.subr.mxu0 0.0
    %260 = vmatpush1.msra.mxu0 0.0
    %261 = vmatprep.subr.mxu0 0.0
    %262 = vmatpush1.msra.mxu0 0.0
    %263 = vmatprep.subr.mxu0 0.0
    %264 = vmatpush1.msra.mxu0 0.0
    %265 = vmatprep.subr.mxu0 0.0
    %266 = vmatpush1.msra.mxu0 0.0
    %267 = vmatprep.subr.mxu0 0.0
    %268 = vmatpush1.msra.mxu0 0.0
    %269 = vmatprep.subr.mxu0 0.0
    %270 = vmatpush1.msra.mxu0 0.0
    %271 = vmatprep.mubr.f32.mxu0 0.0
    %272 = vmatmul.mubr.f32.gmra.mrb[0].mxu0 %v175
    %v273 = vpop.f32.mrb[0].mxu0
    %v274 = vadd.f32 0.0, %v273
    %v275 = vpop.f32.mrb[0].mxu0
    %276 = vmatprep.mubr.f32.mxu0 0.0
    %277 = vmatmul.mubr.f32.gmra.mrb[0].mxu0 %v177
    %v278 = vpop.f32.mrb[0].mxu0
    %v279 = vadd.f32 0.0, %v278
    %v280 = vpop.f32.mrb[0].mxu0
    %281 = vmatprep.mubr.f32.mxu0 0.0
    %282 = vmatmul.mubr.f32.gmra.mrb[0].mxu0 %v179
    %v283 = vpop.f32.mrb[0].mxu0
    %v284 = vadd.f32 0.0, %v283
    %v285 = vpop.f32.mrb[0].mxu0
    %286 = vmatprep.mubr.f32.mxu0 0.0
    %287 = vmatmul.mubr.f32.gmra.mrb[0].mxu0 %v181
    %v288 = vpop.f32.mrb[0].mxu0
    %v289 = vadd.f32 0.0, %v288
    %v290 = vpop.f32.mrb[0].mxu0
    %291 = vmatprep.mubr.f32.mxu0 0.0
    %292 = vmatmul.mubr.f32.gmra.mrb[0].mxu0 %v183
    %v293 = vpop.f32.mrb[0].mxu0
    %v294 = vadd.f32 0.0, %v293
    %v295 = vpop.f32.mrb[0].mxu0
    %296 = vmatprep.mubr.f32.mxu0 0.0
    %297 = vmatmul.mubr.f32.gmra.mrb[0].mxu0 %v185
    %v298 = vpop.f32.mrb[0].mxu0
    %v299 = vadd.f32 0.0, %v298
    %v300 = vpop.f32.mrb[0].mxu0
    %301 = vmatprep.mubr.f32.mxu0 0.0
    %302 = vmatmul.mubr.f32.gmra.mrb[0].mxu0 %v187
    %v303 = vpop.f32.mrb[0].mxu0
    %v304 = vadd.f32 0.0, %v303
    %v305 = vpop.f32.mrb[0].mxu0
    %306 = vmatprep.mubr.f32.mxu0 0.0
    %307 = vmatmul.mubr.f32.gmra.mrb[0].mxu0 %v189
    %v308 = vpop.f32.mrb[0].mxu0
    %v309 = vadd.f32 0.0, %v308
    %v310 = vpop.f32.mrb[0].mxu0
    %311 = vmatprep.mubr.f32.mxu0 0.0
    %312 = vmatmul.mubr.f32.gmra.mrb[0].mxu0 %v191
    %v313 = vpop.f32.mrb[0].mxu0
    %v314 = vadd.f32 0.0, %v313
    %v315 = vpop.f32.mrb[0].mxu0
    %316 = vmatprep.mubr.f32.mxu0 0.0
    %317 = vmatmul.mubr.f32.gmra.mrb[0].mxu0 %v193
    %v318 = vpop.f32.mrb[0].mxu0
    %v319 = vadd.f32 0.0, %v318
    %v320 = vpop.f32.mrb[0].mxu0
    %321 = vmatprep.mubr.f32.mxu0 0.0
    %322 = vmatmul.mubr.f32.gmra.mrb[0].mxu0 %v195
    %v323 = vpop.f32.mrb[0].mxu0
    %v324 = vadd.f32 0.0, %v323
    %v325 = vpop.f32.mrb[0].mxu0
    %326 = vmatprep.mubr.f32.mxu0 0.0
    %327 = vmatmul.mubr.f32.gmra.mrb[0].mxu0 %v197
    %v328 = vpop.f32.mrb[0].mxu0
    %v329 = vadd.f32 0.0, %v328
    %v330 = vpop.f32.mrb[0].mxu0
    %331 = vmatprep.mubr.f32.mxu0 0.0
    %332 = vmatmul.mubr.f32.gmra.mrb[0].mxu0 %v199
    %v333 = vpop.f32.mrb[0].mxu0
    %v334 = vadd.f32 0.0, %v333
    %v335 = vpop.f32.mrb[0].mxu0
    %336 = vmatprep.mubr.f32.mxu0 0.0
    %337 = vmatmul.mubr.f32.gmra.mrb[0].mxu0 %v201
    %v338 = vpop.f32.mrb[0].mxu0
    %v339 = vadd.f32 0.0, %v338
    %v340 = vpop.f32.mrb[0].mxu0
    %341 = vmatprep.mubr.f32.mxu0 0.0
    %342 = vmatmul.mubr.f32.gmra.mrb[0].mxu0 %v203
    %v343 = vpop.f32.mrb[0].mxu0
    %v344 = vadd.f32 0.0, %v343
    %v345 = vpop.f32.mrb[0].mxu0
    %346 = vmatprep.mubr.f32.mxu0 0.0
    %347 = vmatmul.mubr.f32.gmra.mrb[0].mxu0 %v205
    %v348 = vpop.f32.mrb[0].mxu0
    %v349 = vadd.f32 0.0, %v348
    %v350 = vpop.f32.mrb[0].mxu0
    %351 = vdwg.mxu0
    %v353 = vsel %vm174, %v108, 0
    %v355 = vsel %vm174, %v78, 0
    %v358 = vsel %vm174, %v109, 0
    %v360 = vsel %vm174, %v81, 0
    %v363 = vsel %vm174, %v110, 0
    %v365 = vsel %vm174, %v84, 0
    %v368 = vsel %vm174, %v111, 0
    %v370 = vsel %vm174, %v87, 0
    %v373 = vsel %vm174, %v112, 0
    %v375 = vsel %vm174, %v90, 0
    %v378 = vsel %vm174, %v113, 0
    %v380 = vsel %vm174, %v93, 0
    %v383 = vsel %vm174, %v114, 0
    %v385 = vsel %vm174, %v96, 0
    %v388 = vsel %vm174, %v115, 0
    %v390 = vsel %vm174, %v99, 0
    %392 = vmatprep.subr.mxu0 0.0
    %393 = vmatpush1.msra.mxu0 %v157
    %394 = vmatprep.subr.mxu0 0.0
    %395 = vmatpush1.msra.mxu0 %v158
    %396 = vmatprep.subr.mxu0 0.0
    %397 = vmatpush1.msra.mxu0 %v159
    %398 = vmatprep.subr.mxu0 0.0
    %399 = vmatpush1.msra.mxu0 %v160
    %400 = vmatprep.subr.mxu0 0.0
    %401 = vmatpush1.msra.mxu0 %v161
    %402 = vmatprep.subr.mxu0 0.0
    %403 = vmatpush1.msra.mxu0 %v162
    %404 = vmatprep.subr.mxu0 0.0
    %405 = vmatpush1.msra.mxu0 %v163
    %406 = vmatprep.subr.mxu0 0.0
    %407 = vmatpush1.msra.mxu0 %v164
    %408 = vmatprep.subr.mxu0 0.0
    %409 = vmatpush1.msra.mxu0 0.0
    %410 = vmatprep.subr.mxu0 0.0
    %411 = vmatpush1.msra.mxu0 0.0
    %412 = vmatprep.subr.mxu0 0.0
    %413 = vmatpush1.msra.mxu0 0.0
    %414 = vmatprep.subr.mxu0 0.0
    %415 = vmatpush1.msra.mxu0 0.0
    %416 = vmatprep.subr.mxu0 0.0
    %417 = vmatpush1.msra.mxu0 0.0
    %418 = vmatprep.subr.mxu0 0.0
    %419 = vmatpush1.msra.mxu0 0.0
    %420 = vmatprep.subr.mxu0 0.0
    %421 = vmatpush1.msra.mxu0 0.0
    %422 = vmatprep.subr.mxu0 0.0
    %423 = vmatpush1.msra.mxu0 0.0
    %424 = vmatprep.subr.mxu0 0.0
    %425 = vmatpush1.msra.mxu0 0.0
    %426 = vmatprep.subr.mxu0 0.0
    %427 = vmatpush1.msra.mxu0 0.0
    %428 = vmatprep.subr.mxu0 0.0
    %429 = vmatpush1.msra.mxu0 0.0
    %430 = vmatprep.subr.mxu0 0.0
    %431 = vmatpush1.msra.mxu0 0.0
    %432 = vmatprep.subr.mxu0 0.0
    %433 = vmatpush1.msra.mxu0 0.0
    %434 = vmatprep.subr.mxu0 0.0
    %435 = vmatpush1.msra.mxu0 0.0
    %436 = vmatprep.subr.mxu0 0.0
    %437 = vmatpush1.msra.mxu0 0.0
    %438 = vmatprep.subr.mxu0 0.0
    %439 = vmatpush1.msra.mxu0 0.0
    %440 = vmatprep.subr.mxu0 0.0
    %441 = vmatpush1.msra.mxu0 0.0
    %442 = vmatprep.subr.mxu0 0.0
    %443 = vmatpush1.msra.mxu0 0.0
    %444 = vmatprep.subr.mxu0 0.0
    %445 = vmatpush1.msra.mxu0 0.0
    %446 = vmatprep.subr.mxu0 0.0
    %447 = vmatpush1.msra.mxu0 0.0
    %448 = vmatprep.subr.mxu0 0.0
    %449 = vmatpush1.msra.mxu0 0.0
    %450 = vmatprep.subr.mxu0 0.0
    %451 = vmatpush1.msra.mxu0 0.0
    %452 = vmatprep.subr.mxu0 0.0
    %453 = vmatpush1.msra.mxu0 0.0
    %454 = vmatprep.subr.mxu0 0.0
    %455 = vmatpush1.msra.mxu0 0.0
    %456 = vmatprep.mubr.f32.mxu0 0.0
    %457 = vmatmul.mubr.f32.gmra.mrb[0].mxu0 %v353
    %v458 = vpop.f32.mrb[0].mxu0
    %v459 = vadd.f32 %v274, %v458
    %v460 = vpop.f32.mrb[0].mxu0
    %461 = vmatprep.mubr.f32.mxu0 0.0
    %462 = vmatmul.mubr.f32.gmra.mrb[0].mxu0 %v355
    %v463 = vpop.f32.mrb[0].mxu0
    %v464 = vadd.f32 %v279, %v463
    %v465 = vpop.f32.mrb[0].mxu0
    %466 = vmatprep.mubr.f32.mxu0 0.0
    %467 = vmatmul.mubr.f32.gmra.mrb[0].mxu0 %v358
    %v468 = vpop.f32.mrb[0].mxu0
    %v469 = vadd.f32 %v284, %v468
    %v470 = vpop.f32.mrb[0].mxu0
    %471 = vmatprep.mubr.f32.mxu0 0.0
    %472 = vmatmul.mubr.f32.gmra.mrb[0].mxu0 %v360
    %v473 = vpop.f32.mrb[0].mxu0
    %v474 = vadd.f32 %v289, %v473
    %v475 = vpop.f32.mrb[0].mxu0
    %476 = vmatprep.mubr.f32.mxu0 0.0
    %477 = vmatmul.mubr.f32.gmra.mrb[0].mxu0 %v363
    %v478 = vpop.f32.mrb[0].mxu0
    %v479 = vadd.f32 %v294, %v478
    %v480 = vpop.f32.mrb[0].mxu0
    %481 = vmatprep.mubr.f32.mxu0 0.0
    %482 = vmatmul.mubr.f32.gmra.mrb[0].mxu0 %v365
    %v483 = vpop.f32.mrb[0].mxu0
    %v484 = vadd.f32 %v299, %v483
    %v485 = vpop.f32.mrb[0].mxu0
    %486 = vmatprep.mubr.f32.mxu0 0.0
    %487 = vmatmul.mubr.f32.gmra.mrb[0].mxu0 %v368
    %v488 = vpop.f32.mrb[0].mxu0
    %v489 = vadd.f32 %v304, %v488
    %v490 = vpop.f32.mrb[0].mxu0
    %491 = vmatprep.mubr.f32.mxu0 0.0
    %492 = vmatmul.mubr.f32.gmra.mrb[0].mxu0 %v370
    %v493 = vpop.f32.mrb[0].mxu0
    %v494 = vadd.f32 %v309, %v493
    %v495 = vpop.f32.mrb[0].mxu0
    %496 = vmatprep.mubr.f32.mxu0 0.0
    %497 = vmatmul.mubr.f32.gmra.mrb[0].mxu0 %v373
    %v498 = vpop.f32.mrb[0].mxu0
    %v499 = vadd.f32 %v314, %v498
    %v500 = vpop.f32.mrb[0].mxu0
    %501 = vmatprep.mubr.f32.mxu0 0.0
    %502 = vmatmul.mubr.f32.gmra.mrb[0].mxu0 %v375
    %v503 = vpop.f32.mrb[0].mxu0
    %v504 = vadd.f32 %v319, %v503
    %v505 = vpop.f32.mrb[0].mxu0
    %506 = vmatprep.mubr.f32.mxu0 0.0
    %507 = vmatmul.mubr.f32.gmra.mrb[0].mxu0 %v378
    %v508 = vpop.f32.mrb[0].mxu0
    %v509 = vadd.f32 %v324, %v508
    %v510 = vpop.f32.mrb[0].mxu0
    %511 = vmatprep.mubr.f32.mxu0 0.0
    %512 = vmatmul.mubr.f32.gmra.mrb[0].mxu0 %v380
    %v513 = vpop.f32.mrb[0].mxu0
    %v514 = vadd.f32 %v329, %v513
    %v515 = vpop.f32.mrb[0].mxu0
    %516 = vmatprep.mubr.f32.mxu0 0.0
    %517 = vmatmul.mubr.f32.gmra.mrb[0].mxu0 %v383
    %v518 = vpop.f32.mrb[0].mxu0
    %v519 = vadd.f32 %v334, %v518
    %v520 = vpop.f32.mrb[0].mxu0
    %521 = vmatprep.mubr.f32.mxu0 0.0
    %522 = vmatmul.mubr.f32.gmra.mrb[0].mxu0 %v385
    %v523 = vpop.f32.mrb[0].mxu0
    %v524 = vadd.f32 %v339, %v523
    %v525 = vpop.f32.mrb[0].mxu0
    %526 = vmatprep.mubr.f32.mxu0 0.0
    %527 = vmatmul.mubr.f32.gmra.mrb[0].mxu0 %v388
    %v528 = vpop.f32.mrb[0].mxu0
    %v529 = vadd.f32 %v344, %v528
    %v530 = vpop.f32.mrb[0].mxu0
    %531 = vmatprep.mubr.f32.mxu0 0.0
    %532 = vmatmul.mubr.f32.gmra.mrb[0].mxu0 %v390
    %v533 = vpop.f32.mrb[0].mxu0
    %v534 = vadd.f32 %v349, %v533
    %v535 = vpop.f32.mrb[0].mxu0
    %536 = vdwg.mxu0
    %s537 = scalar_lea.vmem [#allocation5], 128
    %v538 = vld [vmem:[%s537] sm:$0xff]
    %v539 = vld [vmem:[%s537 + $0x8] sm:$0xff]
    %v540 = vld [vmem:[%s537 + $0x10] sm:$0xff]
    %v541 = vld [vmem:[%s537 + $0x18] sm:$0xff]
    %v542 = vld [vmem:[%s537 + $0x20] sm:$0xff]
    %v543 = vld [vmem:[%s537 + $0x28] sm:$0xff]
    %v544 = vld [vmem:[%s537 + $0x30] sm:$0xff]
    %v545 = vld [vmem:[%s537 + $0x38] sm:$0xff]
    %v546 = vsel %vm174, %v119, 0
    %v549 = vsel %vm174, %v149, 0
    %v551 = vsel %vm174, %v122, 0
    %v554 = vsel %vm174, %v150, 0
    %v556 = vsel %vm174, %v125, 0
    %v559 = vsel %vm174, %v151, 0
    %v561 = vsel %vm174, %v128, 0
    %v564 = vsel %vm174, %v152, 0
    %v566 = vsel %vm174, %v131, 0
    %v569 = vsel %vm174, %v153, 0
    %v571 = vsel %vm174, %v134, 0
    %v574 = vsel %vm174, %v154, 0
    %v576 = vsel %vm174, %v137, 0
    %v579 = vsel %vm174, %v155, 0
    %v581 = vsel %vm174, %v140, 0
    %v584 = vsel %vm174, %v156, 0
    %586 = vmatprep.subr.mxu0 0.0
    %587 = vmatpush1.msra.mxu0 %v538
    %588 = vmatprep.subr.mxu0 0.0
    %589 = vmatpush1.msra.mxu0 %v539
    %590 = vmatprep.subr.mxu0 0.0
    %591 = vmatpush1.msra.mxu0 %v540
    %592 = vmatprep.subr.mxu0 0.0
    %593 = vmatpush1.msra.mxu0 %v541
    %594 = vmatprep.subr.mxu0 0.0
    %595 = vmatpush1.msra.mxu0 %v542
    %596 = vmatprep.subr.mxu0 0.0
    %597 = vmatpush1.msra.mxu0 %v543
    %598 = vmatprep.subr.mxu0 0.0
    %599 = vmatpush1.msra.mxu0 %v544
    %600 = vmatprep.subr.mxu0 0.0
    %601 = vmatpush1.msra.mxu0 %v545
    %602 = vmatprep.subr.mxu0 0.0
    %603 = vmatpush1.msra.mxu0 0.0
    %604 = vmatprep.subr.mxu0 0.0
    %605 = vmatpush1.msra.mxu0 0.0
    %606 = vmatprep.subr.mxu0 0.0
    %607 = vmatpush1.msra.mxu0 0.0
    %608 = vmatprep.subr.mxu0 0.0
    %609 = vmatpush1.msra.mxu0 0.0
    %610 = vmatprep.subr.mxu0 0.0
    %611 = vmatpush1.msra.mxu0 0.0
    %612 = vmatprep.subr.mxu0 0.0
    %613 = vmatpush1.msra.mxu0 0.0
    %614 = vmatprep.subr.mxu0 0.0
    %615 = vmatpush1.msra.mxu0 0.0
    %616 = vmatprep.subr.mxu0 0.0
    %617 = vmatpush1.msra.mxu0 0.0
    %618 = vmatprep.subr.mxu0 0.0
    %619 = vmatpush1.msra.mxu0 0.0
    %620 = vmatprep.subr.mxu0 0.0
    %621 = vmatpush1.msra.mxu0 0.0
    %622 = vmatprep.subr.mxu0 0.0
    %623 = vmatpush1.msra.mxu0 0.0
    %624 = vmatprep.subr.mxu0 0.0
    %625 = vmatpush1.msra.mxu0 0.0
    %626 = vmatprep.subr.mxu0 0.0
    %627 = vmatpush1.msra.mxu0 0.0
    %628 = vmatprep.subr.mxu0 0.0
    %629 = vmatpush1.msra.mxu0 0.0
    %630 = vmatprep.subr.mxu0 0.0
    %631 = vmatpush1.msra.mxu0 0.0
    %632 = vmatprep.subr.mxu0 0.0
    %633 = vmatpush1.msra.mxu0 0.0
    %634 = vmatprep.subr.mxu0 0.0
    %635 = vmatpush1.msra.mxu0 0.0
    %636 = vmatprep.subr.mxu0 0.0
    %637 = vmatpush1.msra.mxu0 0.0
    %638 = vmatprep.subr.mxu0 0.0
    %639 = vmatpush1.msra.mxu0 0.0
    %640 = vmatprep.subr.mxu0 0.0
    %641 = vmatpush1.msra.mxu0 0.0
    %642 = vmatprep.subr.mxu0 0.0
    %643 = vmatpush1.msra.mxu0 0.0
    %644 = vmatprep.subr.mxu0 0.0
    %645 = vmatpush1.msra.mxu0 0.0
    %646 = vmatprep.subr.mxu0 0.0
    %647 = vmatpush1.msra.mxu0 0.0
    %648 = vmatprep.subr.mxu0 0.0
    %649 = vmatpush1.msra.mxu0 0.0
    %650 = vmatprep.mubr.f32.mxu0 0.0
    %651 = vmatmul.mubr.f32.gmra.mrb[0].mxu0 %v546
    %v652 = vpop.f32.mrb[0].mxu0
    %v653 = vadd.f32 0.0, %v652
    %v654 = vpop.f32.mrb[0].mxu0
    %655 = vmatprep.mubr.f32.mxu0 0.0
    %656 = vmatmul.mubr.f32.gmra.mrb[0].mxu0 %v549
    %v657 = vpop.f32.mrb[0].mxu0
    %v658 = vadd.f32 0.0, %v657
    %v659 = vpop.f32.mrb[0].mxu0
    %660 = vmatprep.mubr.f32.mxu0 0.0
    %661 = vmatmul.mubr.f32.gmra.mrb[0].mxu0 %v551
    %v662 = vpop.f32.mrb[0].mxu0
    %v663 = vadd.f32 0.0, %v662
    %v664 = vpop.f32.mrb[0].mxu0
    %665 = vmatprep.mubr.f32.mxu0 0.0
    %666 = vmatmul.mubr.f32.gmra.mrb[0].mxu0 %v554
    %v667 = vpop.f32.mrb[0].mxu0
    %v668 = vadd.f32 0.0, %v667
    %v669 = vpop.f32.mrb[0].mxu0
    %670 = vmatprep.mubr.f32.mxu0 0.0
    %671 = vmatmul.mubr.f32.gmra.mrb[0].mxu0 %v556
    %v672 = vpop.f32.mrb[0].mxu0
    %v673 = vadd.f32 0.0, %v672
    %v674 = vpop.f32.mrb[0].mxu0
    %675 = vmatprep.mubr.f32.mxu0 0.0
    %676 = vmatmul.mubr.f32.gmra.mrb[0].mxu0 %v559
    %v677 = vpop.f32.mrb[0].mxu0
    %v678 = vadd.f32 0.0, %v677
    %v679 = vpop.f32.mrb[0].mxu0
    %680 = vmatprep.mubr.f32.mxu0 0.0
    %681 = vmatmul.mubr.f32.gmra.mrb[0].mxu0 %v561
    %v682 = vpop.f32.mrb[0].mxu0
    %v683 = vadd.f32 0.0, %v682
    %v684 = vpop.f32.mrb[0].mxu0
    %685 = vmatprep.mubr.f32.mxu0 0.0
    %686 = vmatmul.mubr.f32.gmra.mrb[0].mxu0 %v564
    %v687 = vpop.f32.mrb[0].mxu0
    %v688 = vadd.f32 0.0, %v687
    %v689 = vpop.f32.mrb[0].mxu0
    %690 = vmatprep.mubr.f32.mxu0 0.0
    %691 = vmatmul.mubr.f32.gmra.mrb[0].mxu0 %v566
    %v692 = vpop.f32.mrb[0].mxu0
    %v693 = vadd.f32 0.0, %v692
    %v694 = vpop.f32.mrb[0].mxu0
    %695 = vmatprep.mubr.f32.mxu0 0.0
    %696 = vmatmul.mubr.f32.gmra.mrb[0].mxu0 %v569
    %v697 = vpop.f32.mrb[0].mxu0
    %v698 = vadd.f32 0.0, %v697
    %v699 = vpop.f32.mrb[0].mxu0
    %700 = vmatprep.mubr.f32.mxu0 0.0
    %701 = vmatmul.mubr.f32.gmra.mrb[0].mxu0 %v571
    %v702 = vpop.f32.mrb[0].mxu0
    %v703 = vadd.f32 0.0, %v702
    %v704 = vpop.f32.mrb[0].mxu0
    %705 = vmatprep.mubr.f32.mxu0 0.0
    %706 = vmatmul.mubr.f32.gmra.mrb[0].mxu0 %v574
    %v707 = vpop.f32.mrb[0].mxu0
    %v708 = vadd.f32 0.0, %v707
    %v709 = vpop.f32.mrb[0].mxu0
    %710 = vmatprep.mubr.f32.mxu0 0.0
    %711 = vmatmul.mubr.f32.gmra.mrb[0].mxu0 %v576
    %v712 = vpop.f32.mrb[0].mxu0
    %v713 = vadd.f32 0.0, %v712
    %v714 = vpop.f32.mrb[0].mxu0
    %715 = vmatprep.mubr.f32.mxu0 0.0
    %716 = vmatmul.mubr.f32.gmra.mrb[0].mxu0 %v579
    %v717 = vpop.f32.mrb[0].mxu0
    %v718 = vadd.f32 0.0, %v717
    %v719 = vpop.f32.mrb[0].mxu0
    %720 = vmatprep.mubr.f32.mxu0 0.0
    %721 = vmatmul.mubr.f32.gmra.mrb[0].mxu0 %v581
    %v722 = vpop.f32.mrb[0].mxu0
    %v723 = vadd.f32 0.0, %v722
    %v724 = vpop.f32.mrb[0].mxu0
    %725 = vmatprep.mubr.f32.mxu0 0.0
    %726 = vmatmul.mubr.f32.gmra.mrb[0].mxu0 %v584
    %v727 = vpop.f32.mrb[0].mxu0
    %v728 = vadd.f32 0.0, %v727
    %v729 = vpop.f32.mrb[0].mxu0
    %730 = vdwg.mxu0
    %v731 = vadd.f32 %v459, %v653
    %v732 = vadd.f32 %v464, %v658
    %v733 = vadd.f32 %v469, %v663
    %v734 = vadd.f32 %v474, %v668
    %v735 = vadd.f32 %v479, %v673
    %v736 = vadd.f32 %v484, %v678
    %v737 = vadd.f32 %v489, %v683
    %v738 = vadd.f32 %v494, %v688
    %v739 = vadd.f32 %v499, %v693
    %v740 = vadd.f32 %v504, %v698
    %v741 = vadd.f32 %v509, %v703
    %v742 = vadd.f32 %v514, %v708
    %v743 = vadd.f32 %v519, %v713
    %v744 = vadd.f32 %v524, %v718
    %v745 = vadd.f32 %v529, %v723
    %v746 = vadd.f32 %v534, %v728
    %v747 = vld [vmem:[%s2] sm:$0x1]
    %v749 = vlaneseq
    %v750 = vshrl.u32 %v749, 7
    %v751 = vsub.s32 0, %v750
    %v752 = vrot.slane %v747, %v751
    %v754 = vadd.f32 %v731, %v752
    %v755 = vadd.f32 %v732, %v752
    %v756 = vadd.f32 %v733, %v752
    %v757 = vadd.f32 %v734, %v752
    %v758 = vadd.f32 %v735, %v752
    %v759 = vadd.f32 %v736, %v752
    %v760 = vadd.f32 %v737, %v752
    %v761 = vadd.f32 %v738, %v752
    %v762 = vadd.f32 %v739, %v752
    %v763 = vadd.f32 %v740, %v752
    %v764 = vadd.f32 %v741, %v752
    %v765 = vadd.f32 %v742, %v752
    %v766 = vadd.f32 %v743, %v752
    %v767 = vadd.f32 %v744, %v752
    %v768 = vadd.f32 %v745, %v752
    %v769 = vadd.f32 %v746, %v752
    %770 = vst [vmem:[#allocation7] sm:$0xff] %v754
    %771 = vst [vmem:[#allocation7 + $0x8] sm:$0xff] %v755
    %772 = vst [vmem:[#allocation7 + $0x10] sm:$0xff] %v756
    %773 = vst [vmem:[#allocation7 + $0x18] sm:$0xff] %v757
    %774 = vst [vmem:[#allocation7 + $0x20] sm:$0xff] %v758
    %775 = vst [vmem:[#allocation7 + $0x28] sm:$0xff] %v759
    %776 = vst [vmem:[#allocation7 + $0x30] sm:$0xff] %v760
    %777 = vst [vmem:[#allocation7 + $0x38] sm:$0xff] %v761
    %778 = vst [vmem:[#allocation7 + $0x40] sm:$0xff] %v762
    %779 = vst [vmem:[#allocation7 + $0x48] sm:$0xff] %v763
    %780 = vst [vmem:[#allocation7 + $0x50] sm:$0xff] %v764
    %781 = vst [vmem:[#allocation7 + $0x58] sm:$0xff] %v765
    %782 = vst [vmem:[#allocation7 + $0x60] sm:$0xff] %v766
    %783 = vst [vmem:[#allocation7 + $0x68] sm:$0xff] %v767
    %784 = vst [vmem:[#allocation7 + $0x70] sm:$0xff] %v768
    %785 = vst [vmem:[#allocation7 + $0x78] sm:$0xff] %v769
    %s786 = scalar_lea.vmem [#allocation2], 128
    %v787 = vld [vmem:[%s786] sm:$0xff]
    %v788 = vld [vmem:[%s786 + $0x8] sm:$0xff]
    %v789 = vld [vmem:[%s786 + $0x10] sm:$0xff]
    %v790 = vld [vmem:[%s786 + $0x18] sm:$0xff]
    %v791 = vld [vmem:[%s786 + $0x20] sm:$0xff]
    %v792 = vld [vmem:[%s786 + $0x28] sm:$0xff]
    %v793 = vld [vmem:[%s786 + $0x30] sm:$0xff]
    %v794 = vld [vmem:[%s786 + $0x38] sm:$0xff]
    %v795 = vld [vmem:[%s786 + $0x40] sm:$0xff]
    %v796 = vld [vmem:[%s786 + $0x48] sm:$0xff]
    %v797 = vld [vmem:[%s786 + $0x50] sm:$0xff]
    %v798 = vld [vmem:[%s786 + $0x58] sm:$0xff]
    %v799 = vld [vmem:[%s786 + $0x60] sm:$0xff]
    %v800 = vld [vmem:[%s786 + $0x68] sm:$0xff]
    %v801 = vld [vmem:[%s786 + $0x70] sm:$0xff]
    %v802 = vld [vmem:[%s786 + $0x78] sm:$0xff]
    %v819 = vrot.slane %v787, 7
    %v820 = vrot.slane %v788, 7
    %v821 = vsel %vm75, %v819, %v820
    %v822 = vrot.slane %v789, 7
    %v823 = vrot.slane %v790, 7
    %v824 = vsel %vm75, %v822, %v823
    %v825 = vrot.slane %v791, 7
    %v826 = vrot.slane %v792, 7
    %v827 = vsel %vm75, %v825, %v826
    %v828 = vrot.slane %v793, 7
    %v829 = vrot.slane %v794, 7
    %v830 = vsel %vm75, %v828, %v829
    %v831 = vrot.slane %v795, 7
    %v832 = vrot.slane %v796, 7
    %v833 = vsel %vm75, %v831, %v832
    %v834 = vrot.slane %v797, 7
    %v835 = vrot.slane %v798, 7
    %v836 = vsel %vm75, %v834, %v835
    %v837 = vrot.slane %v799, 7
    %v838 = vrot.slane %v800, 7
    %v839 = vsel %vm75, %v837, %v838
    %v840 = vrot.slane %v801, 7
    %v841 = vrot.slane %v802, 7
    %v842 = vsel %vm75, %v840, %v841
    %v851 = vsel %vm75, 0.0, %v819
    %v852 = vsel %vm75, 0.0, %v822
    %v853 = vsel %vm75, 0.0, %v825
    %v854 = vsel %vm75, 0.0, %v828
    %v855 = vsel %vm75, 0.0, %v831
    %v856 = vsel %vm75, 0.0, %v834
    %v857 = vsel %vm75, 0.0, %v837
    %v858 = vsel %vm75, 0.0, %v840
    %v859 = vrot.slane %v787, 1
    %v860 = vrot.slane %v788, 1
    %v861 = vsel %vm116, %v859, %v860
    %v862 = vrot.slane %v789, 1
    %v863 = vrot.slane %v790, 1
    %v864 = vsel %vm116, %v862, %v863
    %v865 = vrot.slane %v791, 1
    %v866 = vrot.slane %v792, 1
    %v867 = vsel %vm116, %v865, %v866
    %v868 = vrot.slane %v793, 1
    %v869 = vrot.slane %v794, 1
    %v870 = vsel %vm116, %v868, %v869
    %v871 = vrot.slane %v795, 1
    %v872 = vrot.slane %v796, 1
    %v873 = vsel %vm116, %v871, %v872
    %v874 = vrot.slane %v797, 1
    %v875 = vrot.slane %v798, 1
    %v876 = vsel %vm116, %v874, %v875
    %v877 = vrot.slane %v799, 1
    %v878 = vrot.slane %v800, 1
    %v879 = vsel %vm116, %v877, %v878
    %v880 = vrot.slane %v801, 1
    %v881 = vrot.slane %v802, 1
    %v882 = vsel %vm116, %v880, %v881
    %v891 = vsel %vm116, %v860, 0.0
    %v892 = vsel %vm116, %v863, 0.0
    %v893 = vsel %vm116, %v866, 0.0
    %v894 = vsel %vm116, %v869, 0.0
    %v895 = vsel %vm116, %v872, 0.0
    %v896 = vsel %vm116, %v875, 0.0
    %v897 = vsel %vm116, %v878, 0.0
    %v898 = vsel %vm116, %v881, 0.0
    %v899 = vld [vmem:[#allocation5] sm:$0xff]
    %v900 = vld [vmem:[#allocation5 + $0x8] sm:$0xff]
    %v901 = vld [vmem:[#allocation5 + $0x10] sm:$0xff]
    %v902 = vld [vmem:[#allocation5 + $0x18] sm:$0xff]
    %v903 = vld [vmem:[#allocation5 + $0x20] sm:$0xff]
    %v904 = vld [vmem:[#allocation5 + $0x28] sm:$0xff]
    %v905 = vld [vmem:[#allocation5 + $0x30] sm:$0xff]
    %v906 = vld [vmem:[#allocation5 + $0x38] sm:$0xff]
    %v907 = vld [vmem:[%s165] sm:$0xff]
    %v908 = vld [vmem:[%s165 + $0x8] sm:$0xff]
    %v909 = vld [vmem:[%s165 + $0x10] sm:$0xff]
    %v910 = vld [vmem:[%s165 + $0x18] sm:$0xff]
    %v911 = vld [vmem:[%s165 + $0x20] sm:$0xff]
    %v912 = vld [vmem:[%s165 + $0x28] sm:$0xff]
    %v913 = vld [vmem:[%s165 + $0x30] sm:$0xff]
    %v914 = vld [vmem:[%s165 + $0x38] sm:$0xff]
    %v915 = vsel %vm174, %v787, 0
    %v917 = vsel %vm174, %v788, 0
    %v919 = vsel %vm174, %v789, 0
    %v921 = vsel %vm174, %v790, 0
    %v923 = vsel %vm174, %v791, 0
    %v925 = vsel %vm174, %v792, 0
    %v927 = vsel %vm174, %v793, 0
    %v929 = vsel %vm174, %v794, 0
    %v931 = vsel %vm174, %v795, 0
    %v933 = vsel %vm174, %v796, 0
    %v935 = vsel %vm174, %v797, 0
    %v937 = vsel %vm174, %v798, 0
    %v939 = vsel %vm174, %v799, 0
    %v941 = vsel %vm174, %v800, 0
    %v943 = vsel %vm174, %v801, 0
    %v945 = vsel %vm174, %v802, 0
    %947 = vmatprep.subr.mxu0 0.0
    %948 = vmatpush1.msra.mxu0 %v907
    %949 = vmatprep.subr.mxu0 0.0
    %950 = vmatpush1.msra.mxu0 %v908
    %951 = vmatprep.subr.mxu0 0.0
    %952 = vmatpush1.msra.mxu0 %v909
    %953 = vmatprep.subr.mxu0 0.0
    %954 = vmatpush1.msra.mxu0 %v910
    %955 = vmatprep.subr.mxu0 0.0
    %956 = vmatpush1.msra.mxu0 %v911
    %957 = vmatprep.subr.mxu0 0.0
    %958 = vmatpush1.msra.mxu0 %v912
    %959 = vmatprep.subr.mxu0 0.0
    %960 = vmatpush1.msra.mxu0 %v913
    %961 = vmatprep.subr.mxu0 0.0
    %962 = vmatpush1.msra.mxu0 %v914
    %963 = vmatprep.subr.mxu0 0.0
    %964 = vmatpush1.msra.mxu0 0.0
    %965 = vmatprep.subr.mxu0 0.0
    %966 = vmatpush1.msra.mxu0 0.0
    %967 = vmatprep.subr.mxu0 0.0
    %968 = vmatpush1.msra.mxu0 0.0
    %969 = vmatprep.subr.mxu0 0.0
    %970 = vmatpush1.msra.mxu0 0.0
    %971 = vmatprep.subr.mxu0 0.0
    %972 = vmatpush1.msra.mxu0 0.0
    %973 = vmatprep.subr.mxu0 0.0
    %974 = vmatpush1.msra.mxu0 0.0
    %975 = vmatprep.subr.mxu0 0.0
    %976 = vmatpush1.msra.mxu0 0.0
    %977 = vmatprep.subr.mxu0 0.0
    %978 = vmatpush1.msra.mxu0 0.0
    %979 = vmatprep.subr.mxu0 0.0
    %980 = vmatpush1.msra.mxu0 0.0
    %981 = vmatprep.subr.mxu0 0.0
    %982 = vmatpush1.msra.mxu0 0.0
    %983 = vmatprep.subr.mxu0 0.0
    %984 = vmatpush1.msra.mxu0 0.0
    %985 = vmatprep.subr.mxu0 0.0
    %986 = vmatpush1.msra.mxu0 0.0
    %987 = vmatprep.subr.mxu0 0.0
    %988 = vmatpush1.msra.mxu0 0.0
    %989 = vmatprep.subr.mxu0 0.0
    %990 = vmatpush1.msra.mxu0 0.0
    %991 = vmatprep.subr.mxu0 0.0
    %992 = vmatpush1.msra.mxu0 0.0
    %993 = vmatprep.subr.mxu0 0.0
    %994 = vmatpush1.msra.mxu0 0.0
    %995 = vmatprep.subr.mxu0 0.0
    %996 = vmatpush1.msra.mxu0 0.0
    %997 = vmatprep.subr.mxu0 0.0
    %998 = vmatpush1.msra.mxu0 0.0
    %999 = vmatprep.subr.mxu0 0.0
    %1000 = vmatpush1.msra.mxu0 0.0
    %1001 = vmatprep.subr.mxu0 0.0
    %1002 = vmatpush1.msra.mxu0 0.0
    %1003 = vmatprep.subr.mxu0 0.0
    %1004 = vmatpush1.msra.mxu0 0.0
    %1005 = vmatprep.subr.mxu0 0.0
    %1006 = vmatpush1.msra.mxu0 0.0
    %1007 = vmatprep.subr.mxu0 0.0
    %1008 = vmatpush1.msra.mxu0 0.0
    %1009 = vmatprep.subr.mxu0 0.0
    %1010 = vmatpush1.msra.mxu0 0.0
    %1011 = vmatprep.mubr.f32.mxu0 0.0
    %1012 = vmatmul.mubr.f32.gmra.mrb[0].mxu0 %v915
    %v1013 = vpop.f32.mrb[0].mxu0
    %v1014 = vadd.f32 0.0, %v1013
    %v1015 = vpop.f32.mrb[0].mxu0
    %1016 = vmatprep.mubr.f32.mxu0 0.0
    %1017 = vmatmul.mubr.f32.gmra.mrb[0].mxu0 %v917
    %v1018 = vpop.f32.mrb[0].mxu0
    %v1019 = vadd.f32 0.0, %v1018
    %v1020 = vpop.f32.mrb[0].mxu0
    %1021 = vmatprep.mubr.f32.mxu0 0.0
    %1022 = vmatmul.mubr.f32.gmra.mrb[0].mxu0 %v919
    %v1023 = vpop.f32.mrb[0].mxu0
    %v1024 = vadd.f32 0.0, %v1023
    %v1025 = vpop.f32.mrb[0].mxu0
    %1026 = vmatprep.mubr.f32.mxu0 0.0
    %1027 = vmatmul.mubr.f32.gmra.mrb[0].mxu0 %v921
    %v1028 = vpop.f32.mrb[0].mxu0
    %v1029 = vadd.f32 0.0, %v1028
    %v1030 = vpop.f32.mrb[0].mxu0
    %1031 = vmatprep.mubr.f32.mxu0 0.0
    %1032 = vmatmul.mubr.f32.gmra.mrb[0].mxu0 %v923
    %v1033 = vpop.f32.mrb[0].mxu0
    %v1034 = vadd.f32 0.0, %v1033
    %v1035 = vpop.f32.mrb[0].mxu0
    %1036 = vmatprep.mubr.f32.mxu0 0.0
    %1037 = vmatmul.mubr.f32.gmra.mrb[0].mxu0 %v925
    %v1038 = vpop.f32.mrb[0].mxu0
    %v1039 = vadd.f32 0.0, %v1038
    %v1040 = vpop.f32.mrb[0].mxu0
    %1041 = vmatprep.mubr.f32.mxu0 0.0
    %1042 = vmatmul.mubr.f32.gmra.mrb[0].mxu0 %v927
    %v1043 = vpop.f32.mrb[0].mxu0
    %v1044 = vadd.f32 0.0, %v1043
    %v1045 = vpop.f32.mrb[0].mxu0
    %1046 = vmatprep.mubr.f32.mxu0 0.0
    %1047 = vmatmul.mubr.f32.gmra.mrb[0].mxu0 %v929
    %v1048 = vpop.f32.mrb[0].mxu0
    %v1049 = vadd.f32 0.0, %v1048
    %v1050 = vpop.f32.mrb[0].mxu0
    %1051 = vmatprep.mubr.f32.mxu0 0.0
    %1052 = vmatmul.mubr.f32.gmra.mrb[0].mxu0 %v931
    %v1053 = vpop.f32.mrb[0].mxu0
    %v1054 = vadd.f32 0.0, %v1053
    %v1055 = vpop.f32.mrb[0].mxu0
    %1056 = vmatprep.mubr.f32.mxu0 0.0
    %1057 = vmatmul.mubr.f32.gmra.mrb[0].mxu0 %v933
    %v1058 = vpop.f32.mrb[0].mxu0
    %v1059 = vadd.f32 0.0, %v1058
    %v1060 = vpop.f32.mrb[0].mxu0
    %1061 = vmatprep.mubr.f32.mxu0 0.0
    %1062 = vmatmul.mubr.f32.gmra.mrb[0].mxu0 %v935
    %v1063 = vpop.f32.mrb[0].mxu0
    %v1064 = vadd.f32 0.0, %v1063
    %v1065 = vpop.f32.mrb[0].mxu0
    %1066 = vmatprep.mubr.f32.mxu0 0.0
    %1067 = vmatmul.mubr.f32.gmra.mrb[0].mxu0 %v937
    %v1068 = vpop.f32.mrb[0].mxu0
    %v1069 = vadd.f32 0.0, %v1068
    %v1070 = vpop.f32.mrb[0].mxu0
    %1071 = vmatprep.mubr.f32.mxu0 0.0
    %1072 = vmatmul.mubr.f32.gmra.mrb[0].mxu0 %v939
    %v1073 = vpop.f32.mrb[0].mxu0
    %v1074 = vadd.f32 0.0, %v1073
    %v1075 = vpop.f32.mrb[0].mxu0
    %1076 = vmatprep.mubr.f32.mxu0 0.0
    %1077 = vmatmul.mubr.f32.gmra.mrb[0].mxu0 %v941
    %v1078 = vpop.f32.mrb[0].mxu0
    %v1079 = vadd.f32 0.0, %v1078
    %v1080 = vpop.f32.mrb[0].mxu0
    %1081 = vmatprep.mubr.f32.mxu0 0.0
    %1082 = vmatmul.mubr.f32.gmra.mrb[0].mxu0 %v943
    %v1083 = vpop.f32.mrb[0].mxu0
    %v1084 = vadd.f32 0.0, %v1083
    %v1085 = vpop.f32.mrb[0].mxu0
    %1086 = vmatprep.mubr.f32.mxu0 0.0
    %1087 = vmatmul.mubr.f32.gmra.mrb[0].mxu0 %v945
    %v1088 = vpop.f32.mrb[0].mxu0
    %v1089 = vadd.f32 0.0, %v1088
    %v1090 = vpop.f32.mrb[0].mxu0
    %1091 = vdwg.mxu0
    %v1093 = vsel %vm174, %v851, 0
    %v1095 = vsel %vm174, %v821, 0
    %v1098 = vsel %vm174, %v852, 0
    %v1100 = vsel %vm174, %v824, 0
    %v1103 = vsel %vm174, %v853, 0
    %v1105 = vsel %vm174, %v827, 0
    %v1108 = vsel %vm174, %v854, 0
    %v1110 = vsel %vm174, %v830, 0
    %v1113 = vsel %vm174, %v855, 0
    %v1115 = vsel %vm174, %v833, 0
    %v1118 = vsel %vm174, %v856, 0
    %v1120 = vsel %vm174, %v836, 0
    %v1123 = vsel %vm174, %v857, 0
    %v1125 = vsel %vm174, %v839, 0
    %v1128 = vsel %vm174, %v858, 0
    %v1130 = vsel %vm174, %v842, 0
    %1132 = vmatprep.subr.mxu0 0.0
    %1133 = vmatpush1.msra.mxu0 %v899
    %1134 = vmatprep.subr.mxu0 0.0
    %1135 = vmatpush1.msra.mxu0 %v900
    %1136 = vmatprep.subr.mxu0 0.0
    %1137 = vmatpush1.msra.mxu0 %v901
    %1138 = vmatprep.subr.mxu0 0.0
    %1139 = vmatpush1.msra.mxu0 %v902
    %1140 = vmatprep.subr.mxu0 0.0
    %1141 = vmatpush1.msra.mxu0 %v903
    %1142 = vmatprep.subr.mxu0 0.0
    %1143 = vmatpush1.msra.mxu0 %v904
    %1144 = vmatprep.subr.mxu0 0.0
    %1145 = vmatpush1.msra.mxu0 %v905
    %1146 = vmatprep.subr.mxu0 0.0
    %1147 = vmatpush1.msra.mxu0 %v906
    %1148 = vmatprep.subr.mxu0 0.0
    %1149 = vmatpush1.msra.mxu0 0.0
    %1150 = vmatprep.subr.mxu0 0.0
    %1151 = vmatpush1.msra.mxu0 0.0
    %1152 = vmatprep.subr.mxu0 0.0
    %1153 = vmatpush1.msra.mxu0 0.0
    %1154 = vmatprep.subr.mxu0 0.0
    %1155 = vmatpush1.msra.mxu0 0.0
    %1156 = vmatprep.subr.mxu0 0.0
    %1157 = vmatpush1.msra.mxu0 0.0
    %1158 = vmatprep.subr.mxu0 0.0
    %1159 = vmatpush1.msra.mxu0 0.0
    %1160 = vmatprep.subr.mxu0 0.0
    %1161 = vmatpush1.msra.mxu0 0.0
    %1162 = vmatprep.subr.mxu0 0.0
    %1163 = vmatpush1.msra.mxu0 0.0
    %1164 = vmatprep.subr.mxu0 0.0
    %1165 = vmatpush1.msra.mxu0 0.0
    %1166 = vmatprep.subr.mxu0 0.0
    %1167 = vmatpush1.msra.mxu0 0.0
    %1168 = vmatprep.subr.mxu0 0.0
    %1169 = vmatpush1.msra.mxu0 0.0
    %1170 = vmatprep.subr.mxu0 0.0
    %1171 = vmatpush1.msra.mxu0 0.0
    %1172 = vmatprep.subr.mxu0 0.0
    %1173 = vmatpush1.msra.mxu0 0.0
    %1174 = vmatprep.subr.mxu0 0.0
    %1175 = vmatpush1.msra.mxu0 0.0
    %1176 = vmatprep.subr.mxu0 0.0
    %1177 = vmatpush1.msra.mxu0 0.0
    %1178 = vmatprep.subr.mxu0 0.0
    %1179 = vmatpush1.msra.mxu0 0.0
    %1180 = vmatprep.subr.mxu0 0.0
    %1181 = vmatpush1.msra.mxu0 0.0
    %1182 = vmatprep.subr.mxu0 0.0
    %1183 = vmatpush1.msra.mxu0 0.0
    %1184 = vmatprep.subr.mxu0 0.0
    %1185 = vmatpush1.msra.mxu0 0.0
    %1186 = vmatprep.subr.mxu0 0.0
    %1187 = vmatpush1.msra.mxu0 0.0
    %1188 = vmatprep.subr.mxu0 0.0
    %1189 = vmatpush1.msra.mxu0 0.0
    %1190 = vmatprep.subr.mxu0 0.0
    %1191 = vmatpush1.msra.mxu0 0.0
    %1192 = vmatprep.subr.mxu0 0.0
    %1193 = vmatpush1.msra.mxu0 0.0
    %1194 = vmatprep.subr.mxu0 0.0
    %1195 = vmatpush1.msra.mxu0 0.0
    %1196 = vmatprep.mubr.f32.mxu0 0.0
    %1197 = vmatmul.mubr.f32.gmra.mrb[0].mxu0 %v1093
    %v1198 = vpop.f32.mrb[0].mxu0
    %v1199 = vadd.f32 %v1014, %v1198
    %v1200 = vpop.f32.mrb[0].mxu0
    %1201 = vmatprep.mubr.f32.mxu0 0.0
    %1202 = vmatmul.mubr.f32.gmra.mrb[0].mxu0 %v1095
    %v1203 = vpop.f32.mrb[0].mxu0
    %v1204 = vadd.f32 %v1019, %v1203
    %v1205 = vpop.f32.mrb[0].mxu0
    %1206 = vmatprep.mubr.f32.mxu0 0.0
    %1207 = vmatmul.mubr.f32.gmra.mrb[0].mxu0 %v1098
    %v1208 = vpop.f32.mrb[0].mxu0
    %v1209 = vadd.f32 %v1024, %v1208
    %v1210 = vpop.f32.mrb[0].mxu0
    %1211 = vmatprep.mubr.f32.mxu0 0.0
    %1212 = vmatmul.mubr.f32.gmra.mrb[0].mxu0 %v1100
    %v1213 = vpop.f32.mrb[0].mxu0
    %v1214 = vadd.f32 %v1029, %v1213
    %v1215 = vpop.f32.mrb[0].mxu0
    %1216 = vmatprep.mubr.f32.mxu0 0.0
    %1217 = vmatmul.mubr.f32.gmra.mrb[0].mxu0 %v1103
    %v1218 = vpop.f32.mrb[0].mxu0
    %v1219 = vadd.f32 %v1034, %v1218
    %v1220 = vpop.f32.mrb[0].mxu0
    %1221 = vmatprep.mubr.f32.mxu0 0.0
    %1222 = vmatmul.mubr.f32.gmra.mrb[0].mxu0 %v1105
    %v1223 = vpop.f32.mrb[0].mxu0
    %v1224 = vadd.f32 %v1039, %v1223
    %v1225 = vpop.f32.mrb[0].mxu0
    %1226 = vmatprep.mubr.f32.mxu0 0.0
    %1227 = vmatmul.mubr.f32.gmra.mrb[0].mxu0 %v1108
    %v1228 = vpop.f32.mrb[0].mxu0
    %v1229 = vadd.f32 %v1044, %v1228
    %v1230 = vpop.f32.mrb[0].mxu0
    %1231 = vmatprep.mubr.f32.mxu0 0.0
    %1232 = vmatmul.mubr.f32.gmra.mrb[0].mxu0 %v1110
    %v1233 = vpop.f32.mrb[0].mxu0
    %v1234 = vadd.f32 %v1049, %v1233
    %v1235 = vpop.f32.mrb[0].mxu0
    %1236 = vmatprep.mubr.f32.mxu0 0.0
    %1237 = vmatmul.mubr.f32.gmra.mrb[0].mxu0 %v1113
    %v1238 = vpop.f32.mrb[0].mxu0
    %v1239 = vadd.f32 %v1054, %v1238
    %v1240 = vpop.f32.mrb[0].mxu0
    %1241 = vmatprep.mubr.f32.mxu0 0.0
    %1242 = vmatmul.mubr.f32.gmra.mrb[0].mxu0 %v1115
    %v1243 = vpop.f32.mrb[0].mxu0
    %v1244 = vadd.f32 %v1059, %v1243
    %v1245 = vpop.f32.mrb[0].mxu0
    %1246 = vmatprep.mubr.f32.mxu0 0.0
    %1247 = vmatmul.mubr.f32.gmra.mrb[0].mxu0 %v1118
    %v1248 = vpop.f32.mrb[0].mxu0
    %v1249 = vadd.f32 %v1064, %v1248
    %v1250 = vpop.f32.mrb[0].mxu0
    %1251 = vmatprep.mubr.f32.mxu0 0.0
    %1252 = vmatmul.mubr.f32.gmra.mrb[0].mxu0 %v1120
    %v1253 = vpop.f32.mrb[0].mxu0
    %v1254 = vadd.f32 %v1069, %v1253
    %v1255 = vpop.f32.mrb[0].mxu0
    %1256 = vmatprep.mubr.f32.mxu0 0.0
    %1257 = vmatmul.mubr.f32.gmra.mrb[0].mxu0 %v1123
    %v1258 = vpop.f32.mrb[0].mxu0
    %v1259 = vadd.f32 %v1074, %v1258
    %v1260 = vpop.f32.mrb[0].mxu0
    %1261 = vmatprep.mubr.f32.mxu0 0.0
    %1262 = vmatmul.mubr.f32.gmra.mrb[0].mxu0 %v1125
    %v1263 = vpop.f32.mrb[0].mxu0
    %v1264 = vadd.f32 %v1079, %v1263
    %v1265 = vpop.f32.mrb[0].mxu0
    %1266 = vmatprep.mubr.f32.mxu0 0.0
    %1267 = vmatmul.mubr.f32.gmra.mrb[0].mxu0 %v1128
    %v1268 = vpop.f32.mrb[0].mxu0
    %v1269 = vadd.f32 %v1084, %v1268
    %v1270 = vpop.f32.mrb[0].mxu0
    %1271 = vmatprep.mubr.f32.mxu0 0.0
    %1272 = vmatmul.mubr.f32.gmra.mrb[0].mxu0 %v1130
    %v1273 = vpop.f32.mrb[0].mxu0
    %v1274 = vadd.f32 %v1089, %v1273
    %v1275 = vpop.f32.mrb[0].mxu0
    %1276 = vdwg.mxu0
    %v1277 = vld [vmem:[%s537] sm:$0xff]
    %v1278 = vld [vmem:[%s537 + $0x8] sm:$0xff]
    %v1279 = vld [vmem:[%s537 + $0x10] sm:$0xff]
    %v1280 = vld [vmem:[%s537 + $0x18] sm:$0xff]
    %v1281 = vld [vmem:[%s537 + $0x20] sm:$0xff]
    %v1282 = vld [vmem:[%s537 + $0x28] sm:$0xff]
    %v1283 = vld [vmem:[%s537 + $0x30] sm:$0xff]
    %v1284 = vld [vmem:[%s537 + $0x38] sm:$0xff]
    %v1285 = vsel %vm174, %v861, 0
    %v1288 = vsel %vm174, %v891, 0
    %v1290 = vsel %vm174, %v864, 0
    %v1293 = vsel %vm174, %v892, 0
    %v1295 = vsel %vm174, %v867, 0
    %v1298 = vsel %vm174, %v893, 0
    %v1300 = vsel %vm174, %v870, 0
    %v1303 = vsel %vm174, %v894, 0
    %v1305 = vsel %vm174, %v873, 0
    %v1308 = vsel %vm174, %v895, 0
    %v1310 = vsel %vm174, %v876, 0
    %v1313 = vsel %vm174, %v896, 0
    %v1315 = vsel %vm174, %v879, 0
    %v1318 = vsel %vm174, %v897, 0
    %v1320 = vsel %vm174, %v882, 0
    %v1323 = vsel %vm174, %v898, 0
    %1325 = vmatprep.subr.mxu0 0.0
    %1326 = vmatpush1.msra.mxu0 %v1277
    %1327 = vmatprep.subr.mxu0 0.0
    %1328 = vmatpush1.msra.mxu0 %v1278
    %1329 = vmatprep.subr.mxu0 0.0
    %1330 = vmatpush1.msra.mxu0 %v1279
    %1331 = vmatprep.subr.mxu0 0.0
    %1332 = vmatpush1.msra.mxu0 %v1280
    %1333 = vmatprep.subr.mxu0 0.0
    %1334 = vmatpush1.msra.mxu0 %v1281
    %1335 = vmatprep.subr.mxu0 0.0
    %1336 = vmatpush1.msra.mxu0 %v1282
    %1337 = vmatprep.subr.mxu0 0.0
    %1338 = vmatpush1.msra.mxu0 %v1283
    %1339 = vmatprep.subr.mxu0 0.0
    %1340 = vmatpush1.msra.mxu0 %v1284
    %1341 = vmatprep.subr.mxu0 0.0
    %1342 = vmatpush1.msra.mxu0 0.0
    %1343 = vmatprep.subr.mxu0 0.0
    %1344 = vmatpush1.msra.mxu0 0.0
    %1345 = vmatprep.subr.mxu0 0.0
    %1346 = vmatpush1.msra.mxu0 0.0
    %1347 = vmatprep.subr.mxu0 0.0
    %1348 = vmatpush1.msra.mxu0 0.0
    %1349 = vmatprep.subr.mxu0 0.0
    %1350 = vmatpush1.msra.mxu0 0.0
    %1351 = vmatprep.subr.mxu0 0.0
    %1352 = vmatpush1.msra.mxu0 0.0
    %1353 = vmatprep.subr.mxu0 0.0
    %1354 = vmatpush1.msra.mxu0 0.0
    %1355 = vmatprep.subr.mxu0 0.0
    %1356 = vmatpush1.msra.mxu0 0.0
    %1357 = vmatprep.subr.mxu0 0.0
    %1358 = vmatpush1.msra.mxu0 0.0
    %1359 = vmatprep.subr.mxu0 0.0
    %1360 = vmatpush1.msra.mxu0 0.0
    %1361 = vmatprep.subr.mxu0 0.0
    %1362 = vmatpush1.msra.mxu0 0.0
    %1363 = vmatprep.subr.mxu0 0.0
    %1364 = vmatpush1.msra.mxu0 0.0
    %1365 = vmatprep.subr.mxu0 0.0
    %1366 = vmatpush1.msra.mxu0 0.0
    %1367 = vmatprep.subr.mxu0 0.0
    %1368 = vmatpush1.msra.mxu0 0.0
    %1369 = vmatprep.subr.mxu0 0.0
    %1370 = vmatpush1.msra.mxu0 0.0
    %1371 = vmatprep.subr.mxu0 0.0
    %1372 = vmatpush1.msra.mxu0 0.0
    %1373 = vmatprep.subr.mxu0 0.0
    %1374 = vmatpush1.msra.mxu0 0.0
    %1375 = vmatprep.subr.mxu0 0.0
    %1376 = vmatpush1.msra.mxu0 0.0
    %1377 = vmatprep.subr.mxu0 0.0
    %1378 = vmatpush1.msra.mxu0 0.0
    %1379 = vmatprep.subr.mxu0 0.0
    %1380 = vmatpush1.msra.mxu0 0.0
    %1381 = vmatprep.subr.mxu0 0.0
    %1382 = vmatpush1.msra.mxu0 0.0
    %1383 = vmatprep.subr.mxu0 0.0
    %1384 = vmatpush1.msra.mxu0 0.0
    %1385 = vmatprep.subr.mxu0 0.0
    %1386 = vmatpush1.msra.mxu0 0.0
    %1387 = vmatprep.subr.mxu0 0.0
    %1388 = vmatpush1.msra.mxu0 0.0
    %1389 = vmatprep.mubr.f32.mxu0 0.0
    %1390 = vmatmul.mubr.f32.gmra.mrb[0].mxu0 %v1285
    %v1391 = vpop.f32.mrb[0].mxu0
    %v1392 = vadd.f32 0.0, %v1391
    %v1393 = vpop.f32.mrb[0].mxu0
    %1394 = vmatprep.mubr.f32.mxu0 0.0
    %1395 = vmatmul.mubr.f32.gmra.mrb[0].mxu0 %v1288
    %v1396 = vpop.f32.mrb[0].mxu0
    %v1397 = vadd.f32 0.0, %v1396
    %v1398 = vpop.f32.mrb[0].mxu0
    %1399 = vmatprep.mubr.f32.mxu0 0.0
    %1400 = vmatmul.mubr.f32.gmra.mrb[0].mxu0 %v1290
    %v1401 = vpop.f32.mrb[0].mxu0
    %v1402 = vadd.f32 0.0, %v1401
    %v1403 = vpop.f32.mrb[0].mxu0
    %1404 = vmatprep.mubr.f32.mxu0 0.0
    %1405 = vmatmul.mubr.f32.gmra.mrb[0].mxu0 %v1293
    %v1406 = vpop.f32.mrb[0].mxu0
    %v1407 = vadd.f32 0.0, %v1406
    %v1408 = vpop.f32.mrb[0].mxu0
    %1409 = vmatprep.mubr.f32.mxu0 0.0
    %1410 = vmatmul.mubr.f32.gmra.mrb[0].mxu0 %v1295
    %v1411 = vpop.f32.mrb[0].mxu0
    %v1412 = vadd.f32 0.0, %v1411
    %v1413 = vpop.f32.mrb[0].mxu0
    %1414 = vmatprep.mubr.f32.mxu0 0.0
    %1415 = vmatmul.mubr.f32.gmra.mrb[0].mxu0 %v1298
    %v1416 = vpop.f32.mrb[0].mxu0
    %v1417 = vadd.f32 0.0, %v1416
    %v1418 = vpop.f32.mrb[0].mxu0
    %1419 = vmatprep.mubr.f32.mxu0 0.0
    %1420 = vmatmul.mubr.f32.gmra.mrb[0].mxu0 %v1300
    %v1421 = vpop.f32.mrb[0].mxu0
    %v1422 = vadd.f32 0.0, %v1421
    %v1423 = vpop.f32.mrb[0].mxu0
    %1424 = vmatprep.mubr.f32.mxu0 0.0
    %1425 = vmatmul.mubr.f32.gmra.mrb[0].mxu0 %v1303
    %v1426 = vpop.f32.mrb[0].mxu0
    %v1427 = vadd.f32 0.0, %v1426
    %v1428 = vpop.f32.mrb[0].mxu0
    %1429 = vmatprep.mubr.f32.mxu0 0.0
    %1430 = vmatmul.mubr.f32.gmra.mrb[0].mxu0 %v1305
    %v1431 = vpop.f32.mrb[0].mxu0
    %v1432 = vadd.f32 0.0, %v1431
    %v1433 = vpop.f32.mrb[0].mxu0
    %1434 = vmatprep.mubr.f32.mxu0 0.0
    %1435 = vmatmul.mubr.f32.gmra.mrb[0].mxu0 %v1308
    %v1436 = vpop.f32.mrb[0].mxu0
    %v1437 = vadd.f32 0.0, %v1436
    %v1438 = vpop.f32.mrb[0].mxu0
    %1439 = vmatprep.mubr.f32.mxu0 0.0
    %1440 = vmatmul.mubr.f32.gmra.mrb[0].mxu0 %v1310
    %v1441 = vpop.f32.mrb[0].mxu0
    %v1442 = vadd.f32 0.0, %v1441
    %v1443 = vpop.f32.mrb[0].mxu0
    %1444 = vmatprep.mubr.f32.mxu0 0.0
    %1445 = vmatmul.mubr.f32.gmra.mrb[0].mxu0 %v1313
    %v1446 = vpop.f32.mrb[0].mxu0
    %v1447 = vadd.f32 0.0, %v1446
    %v1448 = vpop.f32.mrb[0].mxu0
    %1449 = vmatprep.mubr.f32.mxu0 0.0
    %1450 = vmatmul.mubr.f32.gmra.mrb[0].mxu0 %v1315
    %v1451 = vpop.f32.mrb[0].mxu0
    %v1452 = vadd.f32 0.0, %v1451
    %v1453 = vpop.f32.mrb[0].mxu0
    %1454 = vmatprep.mubr.f32.mxu0 0.0
    %1455 = vmatmul.mubr.f32.gmra.mrb[0].mxu0 %v1318
    %v1456 = vpop.f32.mrb[0].mxu0
    %v1457 = vadd.f32 0.0, %v1456
    %v1458 = vpop.f32.mrb[0].mxu0
    %1459 = vmatprep.mubr.f32.mxu0 0.0
    %1460 = vmatmul.mubr.f32.gmra.mrb[0].mxu0 %v1320
    %v1461 = vpop.f32.mrb[0].mxu0
    %v1462 = vadd.f32 0.0, %v1461
    %v1463 = vpop.f32.mrb[0].mxu0
    %1464 = vmatprep.mubr.f32.mxu0 0.0
    %1465 = vmatmul.mubr.f32.gmra.mrb[0].mxu0 %v1323
    %v1466 = vpop.f32.mrb[0].mxu0
    %v1467 = vadd.f32 0.0, %v1466
    %v1468 = vpop.f32.mrb[0].mxu0
    %1469 = vdwg.mxu0
    %v1470 = vadd.f32 %v1199, %v1392
    %v1471 = vadd.f32 %v1204, %v1397
    %v1472 = vadd.f32 %v1209, %v1402
    %v1473 = vadd.f32 %v1214, %v1407
    %v1474 = vadd.f32 %v1219, %v1412
    %v1475 = vadd.f32 %v1224, %v1417
    %v1476 = vadd.f32 %v1229, %v1422
    %v1477 = vadd.f32 %v1234, %v1427
    %v1478 = vadd.f32 %v1239, %v1432
    %v1479 = vadd.f32 %v1244, %v1437
    %v1480 = vadd.f32 %v1249, %v1442
    %v1481 = vadd.f32 %v1254, %v1447
    %v1482 = vadd.f32 %v1259, %v1452
    %v1483 = vadd.f32 %v1264, %v1457
    %v1484 = vadd.f32 %v1269, %v1462
    %v1485 = vadd.f32 %v1274, %v1467
    %v1486 = vld [vmem:[%s2] sm:$0x1]
    %v1488 = vlaneseq
    %v1489 = vshrl.u32 %v1488, 7
    %v1490 = vsub.s32 0, %v1489
    %v1491 = vrot.slane %v1486, %v1490
    %v1493 = vadd.f32 %v1470, %v1491
    %v1494 = vadd.f32 %v1471, %v1491
    %v1495 = vadd.f32 %v1472, %v1491
    %v1496 = vadd.f32 %v1473, %v1491
    %v1497 = vadd.f32 %v1474, %v1491
    %v1498 = vadd.f32 %v1475, %v1491
    %v1499 = vadd.f32 %v1476, %v1491
    %v1500 = vadd.f32 %v1477, %v1491
    %v1501 = vadd.f32 %v1478, %v1491
    %v1502 = vadd.f32 %v1479, %v1491
    %v1503 = vadd.f32 %v1480, %v1491
    %v1504 = vadd.f32 %v1481, %v1491
    %v1505 = vadd.f32 %v1482, %v1491
    %v1506 = vadd.f32 %v1483, %v1491
    %v1507 = vadd.f32 %v1484, %v1491
    %v1508 = vadd.f32 %v1485, %v1491
    %s1509 = scalar_lea.vmem [#allocation7], 128
    %1510 = vst [vmem:[%s1509] sm:$0xff] %v1493
    %1511 = vst [vmem:[%s1509 + $0x8] sm:$0xff] %v1494
    %1512 = vst [vmem:[%s1509 + $0x10] sm:$0xff] %v1495
    %1513 = vst [vmem:[%s1509 + $0x18] sm:$0xff] %v1496
    %1514 = vst [vmem:[%s1509 + $0x20] sm:$0xff] %v1497
    %1515 = vst [vmem:[%s1509 + $0x28] sm:$0xff] %v1498
    %1516 = vst [vmem:[%s1509 + $0x30] sm:$0xff] %v1499
    %1517 = vst [vmem:[%s1509 + $0x38] sm:$0xff] %v1500
    %1518 = vst [vmem:[%s1509 + $0x40] sm:$0xff] %v1501
    %1519 = vst [vmem:[%s1509 + $0x48] sm:$0xff] %v1502
    %1520 = vst [vmem:[%s1509 + $0x50] sm:$0xff] %v1503
    %1521 = vst [vmem:[%s1509 + $0x58] sm:$0xff] %v1504
    %1522 = vst [vmem:[%s1509 + $0x60] sm:$0xff] %v1505
    %1523 = vst [vmem:[%s1509 + $0x68] sm:$0xff] %v1506
    %1524 = vst [vmem:[%s1509 + $0x70] sm:$0xff] %v1507
    %1525 = vst [vmem:[%s1509 + $0x78] sm:$0xff] %v1508
    // Predicated region
    $region22: #{tpu_custom_call.1} parent=1 // pred_check
      _
    $region23: #{tpu_custom_call.1} parent=1 // pred_check_branch
      %1527 = sbr.rel (0) target = $region25
    $region24: #{tpu_custom_call.1} parent=1 // pred_region
      %s1529 = ssub.s32 4096, 4096
      %1530 = vsyncadd [#allocation4], %s1529
      %s1531 = sshll.u32 [#allocation7], 4
      %s1532 = int_to_ptr.vmem [resolvable:$true] %s1531
      %1537 = dma.vmem_to_hbm [thread:$0]  %s1532, 4096, %s3, [#allocation4], 128, 128, 8
    $region25: #{tpu_custom_call.1} parent=1 // pred_fallthru
      _
    // Predicated region
    $region26: #{tpu_custom_call.1} parent=1 // pred_check
      _
    $region27: #{tpu_custom_call.1} parent=1 // pred_check_branch
      %1539 = sbr.rel (0) target = $region29
    $region28: #{tpu_custom_call.1} parent=1 // pred_region
      %1540 = dma.done [#allocation4], 4096
    $region29: #{tpu_custom_call.1} parent=1 // pred_fallthru
      _
    %1541 = vsyncpa [#allocation3], 1
    %1542 = vsyncpa [#allocation6], 1
    %1543 = vsyncpa [#allocation4], 1

</llo_original>
